<compile_context>
chip_gen: v7x
topology: tpu7x:2x2x1
jax: 0.10.0
libtpu: 0.0.40
codegen_flags: <defaults>
</compile_context>

<pallas_src>
import functools

import jax
import jax.numpy as jnp
from jax.experimental import pallas as pl
from jax.experimental.pallas import tpu as pltpu

_LANES = 128


def _mixprop_kernel(x_ref, a_ref, w_ref, b_ref, o_ref, h0_ref,
                    *, gcn_depth, alpha, shared_a):
    # x_ref : (TB, N, C)               node features (native dtype, no upcast)
    # a_ref : (1|TB, N, N)             adjacency (shared_a -> leading dim 1)
    # w_ref : ((gcn_depth+1)*C, Cp)    fused linear weight, Cp = padded c_out
    # b_ref : (1, Cp)                  bias
    # o_ref : (TB, N, Cp)              output (lane-dense: Cp % 128 == 0)
    # h0_ref: (TB, N, (gcn_depth+1)*C) VMEM scratch = the "concat" buffer
    tb, n, c = x_ref.shape

    x = x_ref[...]                                   # (TB, N, C) native dtype
    h0_ref[:, :, 0:c] = x                            # hop-0 slab of the concat buffer

    # Hoisted loop-invariant elementwise work:
    #   * alpha * x once (kept in f32 for the per-hop add)
    #   * (1 - alpha) folded into A once; A stays native dtype for the MXU
    ax = alpha * x.astype(jnp.float32)               # (TB, N, C) f32
    a_sc = a_ref[...] * (1.0 - alpha)                # (1|TB, N, N) native dtype
    if shared_a:
        a_sc = jnp.broadcast_to(a_sc, (tb, n, n))    # cheap leading-dim replicate

    h = x
    # gcn_depth is a static Python int -> fully unrolled at trace time.
    for hop in range(1, gcn_depth + 1):
        # einsum('bwc,bvw->bvc', h, A) == per-batch A @ h.
        # Native-dtype operands, f32 accumulation on the MXU.
        ah = jnp.einsum('bvw,bwc->bvc', a_sc, h,
                        preferred_element_type=jnp.float32)   # (TB, N, C) f32
        h = (ax + ah).astype(x.dtype)
        h0_ref[:, :, hop * c:(hop + 1) * c] = h

    # ONE fused matmul over the whole concat buffer:
    #   (TB*N, (d+1)*C) @ ((d+1)*C, Cp)   -- K = (d+1)*C instead of d+1 tiny K=C dots.
    k_tot = (gcn_depth + 1) * c
    h0 = h0_ref[...].reshape(tb * n, k_tot)           # collapse leading dims (layout no-op)
    acc = jnp.dot(h0, w_ref[...], preferred_element_type=jnp.float32)  # (TB*N, Cp) f32
    acc = acc + b_ref[...].astype(jnp.float32)
    o_ref[...] = acc.reshape(tb, n, -1).astype(o_ref.dtype)


def _pick_block_b(batch, n, row_target=128):
    """Largest divisor of `batch` with TB*N <= row_target, preferring to keep
    >= 2 grid steps so megacore chips can shard the batch grid axis."""
    divisors = [d for d in range(1, batch + 1) if batch % d == 0]
    fits = [d for d in divisors if d * n <= row_target]
    if not fits:
        return 1
    two_step = [d for d in fits if batch // d >= 2]
    return max(two_step) if two_step else max(fits)


def mixprop_forward(x, A, weight, bias, *, gcn_depth, alpha, block_b=None):
    """MixProp forward.

    x:      (B, N, C)
    A:      (B, N, N) or (1, N, N) (shared static-graph adjacency, fetched once)
    weight: ((gcn_depth+1)*C, c_out)   (torch Linear weight, transposed)
    bias:   (c_out,)
    returns (B, N, c_out)
    """
    B, N, C = x.shape
    assert A.shape in ((B, N, N), (1, N, N)), f"bad A shape {A.shape}"
    K, c_out = weight.shape
    assert K == (gcn_depth + 1) * C, "weight rows must equal (gcn_depth+1)*c_in"
    shared_a = A.shape[0] == 1

    # Lane-dense output: pad c_out up to a multiple of 128 so the final store is
    # an unmasked full-lane store; padding is sliced off outside the kernel.
    c_out_p = ((c_out + _LANES - 1) // _LANES) * _LANES
    if c_out_p != c_out:
        weight_p = jnp.pad(weight, ((0, 0), (0, c_out_p - c_out)))
        bias_p = jnp.pad(bias, (0, c_out_p - c_out))
    else:
        weight_p, bias_p = weight, bias
    bias2d = bias_p.reshape(1, c_out_p)

    tb = block_b if block_b is not None else _pick_block_b(B, N)
    assert B % tb == 0, "block_b must divide the batch size"

    a_block = (1, N, N) if shared_a else (tb, N, N)
    a_index = (lambda g: (0, 0, 0)) if shared_a else (lambda g: (g, 0, 0))

    kernel = functools.partial(
        _mixprop_kernel, gcn_depth=gcn_depth, alpha=alpha, shared_a=shared_a)

    out_p = pl.pallas_call(
        kernel,
        out_shape=jax.ShapeDtypeStruct((B, N, c_out_p), x.dtype),
        grid_spec=pltpu.PrefetchScalarGridSpec(
            num_scalar_prefetch=0,
            grid=(B // tb,),
            in_specs=[
                pl.BlockSpec((tb, N, C), lambda g: (g, 0, 0)),
                pl.BlockSpec(a_block, a_index),
                # Grid-invariant blocks (constant index_map): fetched once.
                pl.BlockSpec((K, c_out_p), lambda g: (0, 0)),
                pl.BlockSpec((1, c_out_p), lambda g: (0, 0)),
            ],
            out_specs=pl.BlockSpec((tb, N, c_out_p), lambda g: (g, 0, 0)),
            scratch_shapes=[
                # The "concat" buffer, kept in the input dtype so the fused
                # matmul feeds the MXU native-dtype operands.
                pltpu.VMEM((tb, N, (gcn_depth + 1) * C), x.dtype),
            ],
        ),
        compiler_params=pltpu.CompilerParams(
            dimension_semantics=("parallel",),
        ),
    )(x, A, weight_p, bias2d)

    return out_p[..., :c_out] if c_out_p != c_out else out_p


def mixprop_reference(x, A, weight, bias, *, gcn_depth, alpha):
    """Pure-JAX f32 reference matching the PyTorch forward exactly."""
    B, N, _ = x.shape
    A = jnp.broadcast_to(A, (B, N, N)).astype(jnp.float32)
    x = x.astype(jnp.float32)
    w = weight.astype(jnp.float32)
    b = bias.astype(jnp.float32)
    h0 = x
    h = x
    for _ in range(gcn_depth):
        h = alpha * x + (1.0 - alpha) * jnp.einsum('bwc,bvw->bvc', h, A)
        h0 = jnp.concatenate([h0, h], axis=-1)
    return jnp.einsum('bnk,ko->bno', h0, w) + b


if __name__ == "__main__":
    # Small shapes consistent with the module's forward (x: (B, N, C)).
    B, N, c_in, c_out, gcn_depth, alpha = 8, 16, 8, 16, 3, 0.05

    key = jax.random.PRNGKey(0)
    kx, ka, kw, kb = jax.random.split(key, 4)

    x32 = jax.random.normal(kx, (B, N, c_in), dtype=jnp.float32)
    # row-normalized adjacency (deterministic)
    A32 = jax.nn.softmax(jax.random.normal(ka, (B, N, N), dtype=jnp.float32), axis=-1)

    # Deterministic parameter init mirroring _reset_parameters:
    #   weight (dim>1): xavier_uniform over (c_out, (gcn_depth+1)*c_in); bias: U(0,1)
    fan_in = (gcn_depth + 1) * c_in
    limit = (6.0 / (fan_in + c_out)) ** 0.5
    w_torch = jax.random.uniform(kw, (c_out, fan_in), jnp.float32, -limit, limit)
    w32 = w_torch.T                       # ((gcn_depth+1)*c_in, c_out) for h0 @ W
    b32 = jax.random.uniform(kb, (c_out,), jnp.float32, 0.0, 1.0)

    # --- check 1: f32 inputs, per-batch A (tight tolerance) ---
    out = mixprop_forward(x32, A32, w32, b32, gcn_depth=gcn_depth, alpha=alpha)
    out = jax.block_until_ready(out)
    ref = mixprop_reference(x32, A32, w32, b32, gcn_depth=gcn_depth, alpha=alpha)
    assert out.shape == (B, N, c_out)
    assert jnp.allclose(out, ref, atol=1e-4, rtol=1e-4), "f32 mismatch vs reference"

    # --- check 2: shared (static-graph) adjacency A of shape (1, N, N) ---
    A1 = A32[:1]
    out_s = mixprop_forward(x32, A1, w32, b32, gcn_depth=gcn_depth, alpha=alpha)
    out_s = jax.block_until_ready(out_s)
    ref_s = mixprop_reference(x32, A1, w32, b32, gcn_depth=gcn_depth, alpha=alpha)
    assert jnp.allclose(out_s, ref_s, atol=1e-4, rtol=1e-4), "shared-A mismatch"

    # --- check 3: bf16 operands fed straight to the MXU (f32 accumulate only) ---
    xb, Ab = x32.astype(jnp.bfloat16), A32.astype(jnp.bfloat16)
    wb, bb = w32.astype(jnp.bfloat16), b32.astype(jnp.bfloat16)
    out_b = mixprop_forward(xb, Ab, wb, bb, gcn_depth=gcn_depth, alpha=alpha)
    out_b = jax.block_until_ready(out_b)
    ref_b = mixprop_reference(xb, Ab, wb, bb, gcn_depth=gcn_depth, alpha=alpha)
    assert jnp.allclose(out_b.astype(jnp.float32), ref_b, atol=1e-1, rtol=1e-1), \
        "bf16 mismatch vs f32 reference"

    print("KERNEL_OK")
</pallas_src>

<mosaic_0001>
module attributes {stable_mosaic.version = 11 : i64} {
  func.func @_mixprop_kernel(%arg0: i32, %arg1: memref<4x16x8xf32, #tpu.memory_space<vmem>>, %arg2: memref<4x16x16xf32, #tpu.memory_space<vmem>>, %arg3: memref<32x128xf32, #tpu.memory_space<vmem>>, %arg4: memref<1x128xf32, #tpu.memory_space<vmem>>, %arg5: memref<4x16x128xf32, #tpu.memory_space<vmem>>, %arg6: memref<4x16x32xf32, #tpu.memory_space<vmem>>) attributes {dimension_semantics = [#tpu.dimension_semantics<parallel>], iteration_bounds = array<i64: 2>, scalar_prefetch = 0 : i64, scratch_operands = 1 : i64, tpu.core_type = #tpu.core_type<tc>, window_params = [{transform_indices = @transform_0, window_bounds = array<i64: 4, 16, 8>}, {transform_indices = @transform_1, window_bounds = array<i64: 4, 16, 16>}, {pipeline_mode = #tpu.pipeline_mode<synchronous>, transform_indices = @transform_2, window_bounds = array<i64: 32, 128>}, {pipeline_mode = #tpu.pipeline_mode<synchronous>, transform_indices = @transform_3, window_bounds = array<i64: 1, 128>}, {transform_indices = @transform_4, window_bounds = array<i64: 4, 16, 128>}]} {
    %c0 = arith.constant 0 : index
    %c0_0 = arith.constant 0 : index
    %c0_1 = arith.constant 0 : index
    %0 = vector.load %arg1[%c0, %c0_0, %c0_1] : memref<4x16x8xf32, #tpu.memory_space<vmem>>, vector<4x16x8xf32>
    %c0_2 = arith.constant 0 : index
    %c0_3 = arith.constant 0 : index
    %c0_4 = arith.constant 0 : index
    %1 = vector.load %arg6[%c0_2, %c0_3, %c0_4] : memref<4x16x32xf32, #tpu.memory_space<vmem>>, vector<4x16x8xf32>
    tpu.vector_store %arg6[%c0_2, %c0_3, %c0_4], %0 {strides = array<i32>} : memref<4x16x32xf32, #tpu.memory_space<vmem>>, vector<4x16x8xf32>,
    %cst = arith.constant 5.000000e-02 : f32
    %2 = vector.broadcast %cst : f32 to vector<4x16x8xf32>
    %3 = arith.mulf %2, %0 : vector<4x16x8xf32>
    %c0_5 = arith.constant 0 : index
    %c0_6 = arith.constant 0 : index
    %c0_7 = arith.constant 0 : index
    %4 = vector.load %arg2[%c0_5, %c0_6, %c0_7] : memref<4x16x16xf32, #tpu.memory_space<vmem>>, vector<4x16x16xf32>
    %cst_8 = arith.constant 0.949999988 : f32
    %5 = vector.broadcast %cst_8 : f32 to vector<4x16x16xf32>
    %6 = arith.mulf %4, %5 : vector<4x16x16xf32>
    "tpu.trace_start"() <{level = 10 : i32, message = "bvw,bwc->bvc"}> : () -> ()
    %cst_9 = arith.constant dense<0.000000e+00> : vector<4x16x8xf32>
    %7 = tpu.matmul %6, %0, %cst_9 {dimension_numbers = #tpu.dot_dimension_numbers<[2], [1], [1], [2], [0, 0, 0, 1, 1, 2], [0], [0]>} : vector<4x16x16xf32>, vector<4x16x8xf32>, vector<4x16x8xf32> -> vector<4x16x8xf32>
    "tpu.trace_stop"() : () -> ()
    %8 = arith.addf %3, %7 : vector<4x16x8xf32>
    %c0_10 = arith.constant 0 : index
    %c0_11 = arith.constant 0 : index
    %c8 = arith.constant 8 : index
    %9 = vector.load %arg6[%c0_10, %c0_11, %c8] : memref<4x16x32xf32, #tpu.memory_space<vmem>>, vector<4x16x8xf32>
    tpu.vector_store %arg6[%c0_10, %c0_11, %c8], %8 {strides = array<i32>} : memref<4x16x32xf32, #tpu.memory_space<vmem>>, vector<4x16x8xf32>,
    "tpu.trace_start"() <{level = 10 : i32, message = "bvw,bwc->bvc"}> : () -> ()
    %cst_12 = arith.constant dense<0.000000e+00> : vector<4x16x8xf32>
    %10 = tpu.matmul %6, %8, %cst_12 {dimension_numbers = #tpu.dot_dimension_numbers<[2], [1], [1], [2], [0, 0, 0, 1, 1, 2], [0], [0]>} : vector<4x16x16xf32>, vector<4x16x8xf32>, vector<4x16x8xf32> -> vector<4x16x8xf32>
    "tpu.trace_stop"() : () -> ()
    %11 = arith.addf %3, %10 : vector<4x16x8xf32>
    %c0_13 = arith.constant 0 : index
    %c0_14 = arith.constant 0 : index
    %c16 = arith.constant 16 : index
    %12 = vector.load %arg6[%c0_13, %c0_14, %c16] : memref<4x16x32xf32, #tpu.memory_space<vmem>>, vector<4x16x8xf32>
    tpu.vector_store %arg6[%c0_13, %c0_14, %c16], %11 {strides = array<i32>} : memref<4x16x32xf32, #tpu.memory_space<vmem>>, vector<4x16x8xf32>,
    "tpu.trace_start"() <{level = 10 : i32, message = "bvw,bwc->bvc"}> : () -> ()
    %cst_15 = arith.constant dense<0.000000e+00> : vector<4x16x8xf32>
    %13 = tpu.matmul %6, %11, %cst_15 {dimension_numbers = #tpu.dot_dimension_numbers<[2], [1], [1], [2], [0, 0, 0, 1, 1, 2], [0], [0]>} : vector<4x16x16xf32>, vector<4x16x8xf32>, vector<4x16x8xf32> -> vector<4x16x8xf32>
    "tpu.trace_stop"() : () -> ()
    %14 = arith.addf %3, %13 : vector<4x16x8xf32>
    %c0_16 = arith.constant 0 : index
    %c0_17 = arith.constant 0 : index
    %c24 = arith.constant 24 : index
    %15 = vector.load %arg6[%c0_16, %c0_17, %c24] : memref<4x16x32xf32, #tpu.memory_space<vmem>>, vector<4x16x8xf32>
    tpu.vector_store %arg6[%c0_16, %c0_17, %c24], %14 {strides = array<i32>} : memref<4x16x32xf32, #tpu.memory_space<vmem>>, vector<4x16x8xf32>,
    %c0_18 = arith.constant 0 : index
    %c0_19 = arith.constant 0 : index
    %c0_20 = arith.constant 0 : index
    %16 = vector.load %arg6[%c0_18, %c0_19, %c0_20] : memref<4x16x32xf32, #tpu.memory_space<vmem>>, vector<4x16x32xf32>
    %17 = vector.shape_cast %16 : vector<4x16x32xf32> to vector<64x32xf32>
    %c0_21 = arith.constant 0 : index
    %c0_22 = arith.constant 0 : index
    %18 = vector.load %arg3[%c0_21, %c0_22] : memref<32x128xf32, #tpu.memory_space<vmem>>, vector<32x128xf32>
    %cst_23 = arith.constant dense<0.000000e+00> : vector<64x128xf32>
    %19 = tpu.matmul %17, %18, %cst_23 {dimension_numbers = #tpu.dot_dimension_numbers<[1], [0], [0], [1], [0, 0, 1, 1], [], []>} : vector<64x32xf32>, vector<32x128xf32>, vector<64x128xf32> -> vector<64x128xf32>
    %c0_24 = arith.constant 0 : index
    %c0_25 = arith.constant 0 : index
    %20 = vector.load %arg4[%c0_24, %c0_25] : memref<1x128xf32, #tpu.memory_space<vmem>>, vector<1x128xf32>
    %21 = vector.broadcast %20 : vector<1x128xf32> to vector<64x128xf32>
    %22 = arith.addf %19, %21 : vector<64x128xf32>
    %23 = vector.shape_cast %22 : vector<64x128xf32> to vector<4x16x128xf32>
    %c0_26 = arith.constant 0 : index
    %c0_27 = arith.constant 0 : index
    %c0_28 = arith.constant 0 : index
    %24 = vector.load %arg5[%c0_26, %c0_27, %c0_28] : memref<4x16x128xf32, #tpu.memory_space<vmem>>, vector<4x16x128xf32>
    tpu.vector_store %arg5[%c0_26, %c0_27, %c0_28], %23 {strides = array<i32>} : memref<4x16x128xf32, #tpu.memory_space<vmem>>, vector<4x16x128xf32>,
    return
  }
  func.func @transform_0(%arg0: i32) -> (i32, i32, i32) {
    %c0_i32 = arith.constant 0 : i32
    %c0_i32_0 = arith.constant 0 : i32
    %c0_i32_1 = arith.constant 0 : i32
    return %arg0, %c0_i32, %c0_i32_0 : i32, i32, i32
  }
  func.func @transform_1(%arg0: i32) -> (i32, i32, i32) {
    %c0_i32 = arith.constant 0 : i32
    %c0_i32_0 = arith.constant 0 : i32
    %c0_i32_1 = arith.constant 0 : i32
    return %arg0, %c0_i32, %c0_i32_0 : i32, i32, i32
  }
  func.func @transform_2(%arg0: i32) -> (i32, i32) {
    %c0_i32 = arith.constant 0 : i32
    %c0_i32_0 = arith.constant 0 : i32
    %c0_i32_1 = arith.constant 0 : i32
    return %c0_i32, %c0_i32_0 : i32, i32
  }
  func.func @transform_3(%arg0: i32) -> (i32, i32) {
    %c0_i32 = arith.constant 0 : i32
    %c0_i32_0 = arith.constant 0 : i32
    %c0_i32_1 = arith.constant 0 : i32
    return %c0_i32, %c0_i32_0 : i32, i32
  }
  func.func @transform_4(%arg0: i32) -> (i32, i32, i32) {
    %c0_i32 = arith.constant 0 : i32
    %c0_i32_0 = arith.constant 0 : i32
    %c0_i32_1 = arith.constant 0 : i32
    return %arg0, %c0_i32, %c0_i32_0 : i32, i32, i32
  }
}

</mosaic_0001>

<llo_original>
// kernel: tpu_custom_call.1
$region0: #{tpu_custom_call.1}
  #allocation0 [shape = 'u32[]', space=smem, size = 0x4, offset = 0x4, fixed_abs, tag = 'smem constant byte address 0x4 - core index']
  #allocation1 [shape = 'u32[144,128]{1,0:T(1,128)}', space=vmem, size = 0x12000, scoped, tag = 'internal scratch']
  #allocation2 [shape = 'f32[4,16,32]{2,1,0:T(8,128)}', space=vmem, size = 0x8000, scoped, tag = 'scratch operand']
  %s0 = inlined_call_operand.vmem [shape: f32[8,16,8], index: 0, kind: input, shape index: {}]
  %s1 = inlined_call_operand.vmem [shape: f32[8,16,16], index: 1, kind: input, shape index: {}]
  %s2 = inlined_call_operand.vmem [shape: f32[32,128], index: 2, kind: input, shape index: {}]
  %s3 = inlined_call_operand.vmem [shape: f32[1,128], index: 3, kind: input, shape index: {}]
  %s4 = inlined_call_operand.hbm [shape: f32[8,16,128], index: 4, kind: output, shape index: {}]
  %s5 = sld [smem:[#allocation0]]
  $region49: #{tpu_custom_call.1} parent=0
    _
  %s7 = ssub.s32 1, %s5
  %s8 = scalar_select 0, %s7, %s5
  $region1: #{tpu_custom_call.1} parent=0
    #allocation3 [shape = 'u8[65536]{0}', space=vmem, size = 0x10000, scoped, tag = 'output window, operand 0']
    #allocation4 [shape = 's32[2]{0}', space=sflag, size = 0x8, scoped, tag = 'scoped memory for tpu_custom_call.1']
    %9 = vsyncpa [#allocation4], 0
    %s10 = scalar_lea.sflag [#allocation4], 1
    %11 = vsyncpa %s10, 0
    loop: start=0, step=1, limit=4
    $region2: #{tpu_custom_call.1} parent=1 // loop_pre_header
      _
    $region3: #{tpu_custom_call.1} parent=1 // loop_header
      %s13 = sphi 0, %s17
      %p14 = scmp.ge.s32.totalorder %s13, 4
      %s23 = sphi 0, %s25
      %s26 = sphi 0, %s23
      %s27 = sphi 0, %s26
      %s43 = sphi 0, %s27
      %s49 = sphi 0, %s51
      %s52 = sphi 0, %s49
      %s53 = sphi 0, %s52
      %s69 = sphi 0, %s53
      %s73 = sphi 0, %s73
      %s75 = sphi 0, %s73
      %s76 = sphi 0, %s75
      %s90 = sphi 0, %s76
      %s94 = sphi 0, %s94
      %s96 = sphi 0, %s94
      %s97 = sphi 0, %s96
      %s111 = sphi 0, %s97
      %s117 = sphi 0, %s119
      %s120 = sphi 0, %s117
      %s121 = sphi 0, %s120
      %s137 = sphi 0, %s121
    $region4: #{tpu_custom_call.1} parent=1 // loop_header_branch
      %16 = sbr.rel (%p14) target = $region8
    $region5: #{tpu_custom_call.1} parent=1 // loop_body
      %s18 = ssub.s32 %s13, 1
      %s19 = ssub.s32 %s13, 2
      %s20 = sadd.s32 %s13, 1
      %s21 = ssub.s32 %s13, %s20
      %p22 = scmp.eq.s32.totalorder %s21, 0
      %s24 = sadd.s32 %s23, 1
      %s25 = scalar_select %p22, %s23, %s24
      %p28 = pneg %p22
      %p29 = scmp.eq.s32.totalorder %s13, 1
      %p30 = por %p28, %p29
      %p31 = scmp.ne.s32.totalorder %s23, %s26
      %p32 = scmp.eq.s32.totalorder %s13, 0
      %p33 = por %p31, %p32
      %p34 = scmp.ne.s32.totalorder %s23, %s26
      %p35 = scmp.eq.s32.totalorder %s18, 1
      %p36 = por %p34, %p35
      %p37 = scmp.ne.s32.totalorder %s26, %s27
      %p38 = scmp.eq.s32.totalorder %s18, 0
      %p39 = por %p37, %p38
      %p40 = scmp.ne.s32.totalorder %s26, %s27
      %p41 = scmp.eq.s32.totalorder %s19, 1
      %p42 = por %p40, %p41
      %p44 = scmp.ne.s32.totalorder %s27, %s43
      %p45 = scmp.eq.s32.totalorder %s19, 0
      %p46 = por %p44, %p45
      %s47 = ssub.s32 %s13, %s20
      %p48 = scmp.eq.s32.totalorder %s47, 0
      %s50 = sadd.s32 %s49, 1
      %s51 = scalar_select %p48, %s49, %s50
      %p54 = pneg %p48
      %p55 = scmp.eq.s32.totalorder %s13, 1
      %p56 = por %p54, %p55
      %p57 = scmp.ne.s32.totalorder %s49, %s52
      %p58 = scmp.eq.s32.totalorder %s13, 0
      %p59 = por %p57, %p58
      %p60 = scmp.ne.s32.totalorder %s49, %s52
      %p61 = scmp.eq.s32.totalorder %s18, 1
      %p62 = por %p60, %p61
      %p63 = scmp.ne.s32.totalorder %s52, %s53
      %p64 = scmp.eq.s32.totalorder %s18, 0
      %p65 = por %p63, %p64
      %p66 = scmp.ne.s32.totalorder %s52, %s53
      %p67 = scmp.eq.s32.totalorder %s19, 1
      %p68 = por %p66, %p67
      %p70 = scmp.ne.s32.totalorder %s53, %s69
      %p71 = scmp.eq.s32.totalorder %s19, 0
      %p72 = por %p70, %p71
      %s74 = sadd.s32 %s73, 1
      %p77 = scmp.eq.s32.totalorder %s13, 1
      %p78 = scmp.ne.s32.totalorder %s73, %s75
      %p79 = scmp.eq.s32.totalorder %s13, 0
      %p80 = por %p78, %p79
      %p81 = scmp.ne.s32.totalorder %s73, %s75
      %p82 = scmp.eq.s32.totalorder %s18, 1
      %p83 = por %p81, %p82
      %p84 = scmp.ne.s32.totalorder %s75, %s76
      %p85 = scmp.eq.s32.totalorder %s18, 0
      %p86 = por %p84, %p85
      %p87 = scmp.ne.s32.totalorder %s75, %s76
      %p88 = scmp.eq.s32.totalorder %s19, 1
      %p89 = por %p87, %p88
      %p91 = scmp.ne.s32.totalorder %s76, %s90
      %p92 = scmp.eq.s32.totalorder %s19, 0
      %p93 = por %p91, %p92
      %s95 = sadd.s32 %s94, 1
      %p98 = scmp.eq.s32.totalorder %s13, 1
      %p99 = scmp.ne.s32.totalorder %s94, %s96
      %p100 = scmp.eq.s32.totalorder %s13, 0
      %p101 = por %p99, %p100
      %p102 = scmp.ne.s32.totalorder %s94, %s96
      %p103 = scmp.eq.s32.totalorder %s18, 1
      %p104 = por %p102, %p103
      %p105 = scmp.ne.s32.totalorder %s96, %s97
      %p106 = scmp.eq.s32.totalorder %s18, 0
      %p107 = por %p105, %p106
      %p108 = scmp.ne.s32.totalorder %s96, %s97
      %p109 = scmp.eq.s32.totalorder %s19, 1
      %p110 = por %p108, %p109
      %p112 = scmp.ne.s32.totalorder %s97, %s111
      %p113 = scmp.eq.s32.totalorder %s19, 0
      %p114 = por %p112, %p113
      %s115 = ssub.s32 %s13, %s20
      %p116 = scmp.eq.s32.totalorder %s115, 0
      %s118 = sadd.s32 %s117, 1
      %s119 = scalar_select %p116, %s117, %s118
      %p122 = pneg %p116
      %p123 = scmp.eq.s32.totalorder %s13, 1
      %p124 = por %p122, %p123
      %p125 = scmp.ne.s32.totalorder %s117, %s120
      %p126 = scmp.eq.s32.totalorder %s13, 0
      %p127 = por %p125, %p126
      %p128 = scmp.ne.s32.totalorder %s117, %s120
      %p129 = scmp.eq.s32.totalorder %s18, 1
      %p130 = por %p128, %p129
      %p131 = scmp.ne.s32.totalorder %s120, %s121
      %p132 = scmp.eq.s32.totalorder %s18, 0
      %p133 = por %p131, %p132
      %p134 = scmp.ne.s32.totalorder %s120, %s121
      %p135 = scmp.eq.s32.totalorder %s19, 1
      %p136 = por %p134, %p135
      %p138 = scmp.ne.s32.totalorder %s121, %s137
      %p139 = scmp.eq.s32.totalorder %s19, 0
      %p140 = por %p138, %p139
      %p141 = scmp.le.s32.totalorder 1, %s13
      %p142 = scmp.lt.s32.totalorder %s13, 3
      %p143 = pnand %p141, %p142
      %p144 = pneg %p143
      // Predicated region
      $region9: #{tpu_custom_call.1} parent=5 // pred_check
        _
      $region10: #{tpu_custom_call.1} parent=5 // pred_check_branch
        %146 = sbr.rel (%p143) target = $region12
      $region11: #{tpu_custom_call.1} parent=5 // pred_region
        %s147 = ssub.s32 %s13, 1
        // Predicated region
        $region13: #{tpu_custom_call.1} parent=11 // pred_check
          %p148 = pneg %p86
        $region14: #{tpu_custom_call.1} parent=11 // pred_check_branch
          %150 = sbr.rel (%p148) target = $region16
        $region15: #{tpu_custom_call.1} parent=11 // pred_region
          _
        $region16: #{tpu_custom_call.1} parent=11 // pred_fallthru
          _
        // Predicated region
        $region17: #{tpu_custom_call.1} parent=11 // pred_check
          %p151 = pneg %p107
        $region18: #{tpu_custom_call.1} parent=11 // pred_check_branch
          %153 = sbr.rel (%p151) target = $region20
        $region19: #{tpu_custom_call.1} parent=11 // pred_region
          _
        $region20: #{tpu_custom_call.1} parent=11 // pred_fallthru
          _
      $region12: #{tpu_custom_call.1} parent=5 // pred_fallthru
        _
      %p154 = scmp.lt.s32.totalorder %s13, 2
      // Predicated region
      $region21: #{tpu_custom_call.1} parent=5 // pred_check
        %p155 = pneg %p154
      $region22: #{tpu_custom_call.1} parent=5 // pred_check_branch
        %157 = sbr.rel (%p155) target = $region24
      $region23: #{tpu_custom_call.1} parent=5 // pred_region
        // Predicated region
        $region25: #{tpu_custom_call.1} parent=23 // pred_check
          %p158 = pneg %p33
        $region26: #{tpu_custom_call.1} parent=23 // pred_check_branch
          %160 = sbr.rel (%p158) target = $region28
        $region27: #{tpu_custom_call.1} parent=23 // pred_region
          %s161 = smul.u32 4, %s13
          %p162 = scmp.lt.s32.totalorder %s161, 7
          %s163 = scalar_select %p162, %s161, 7
          %s164 = smul.addr %s163, 2
          %s165 = smul.addr %s164, 8
          %s166 = scalar_lea.vmem %s0, %s165
          %s167 = smul.u32 4, %s13
        $region28: #{tpu_custom_call.1} parent=23 // pred_fallthru
          _
        // Predicated region
        $region29: #{tpu_custom_call.1} parent=23 // pred_check
          %p168 = pneg %p59
        $region30: #{tpu_custom_call.1} parent=23 // pred_check_branch
          %170 = sbr.rel (%p168) target = $region32
        $region31: #{tpu_custom_call.1} parent=23 // pred_region
          %s171 = smul.u32 4, %s13
          %p172 = scmp.lt.s32.totalorder %s171, 7
          %s173 = scalar_select %p172, %s171, 7
          %s174 = smul.addr %s173, 2
          %s175 = smul.addr %s174, 8
          %s176 = scalar_lea.vmem %s1, %s175
          %s177 = smul.u32 4, %s13
        $region32: #{tpu_custom_call.1} parent=23 // pred_fallthru
          _
      $region24: #{tpu_custom_call.1} parent=5 // pred_fallthru
        _
      %p178 = scmp.le.s32.totalorder 1, %s13
      %p179 = scmp.lt.s32.totalorder %s13, 3
      %p180 = pnand %p178, %p179
      %p181 = pneg %p180
      // Predicated region
      $region33: #{tpu_custom_call.1} parent=5 // pred_check
        _
      $region34: #{tpu_custom_call.1} parent=5 // pred_check_branch
        %183 = sbr.rel (%p180) target = $region36
      $region35: #{tpu_custom_call.1} parent=5 // pred_region
        %s184 = ssub.s32 %s13, 1
        %s185 = smul.u32 4, %s18
        %p186 = scmp.lt.s32.totalorder %s185, 7
        %s187 = scalar_select %p186, %s185, 7
        %s188 = smul.addr %s187, 2
        %s189 = smul.addr %s188, 8
        %s190 = scalar_lea.vmem %s0, %s189
        %p191 = pneg %p39
        %p192 = pneg %p36
        %s193 = smul.u32 4, %s18
        %p194 = scmp.lt.s32.totalorder %s193, 7
        %s195 = scalar_select %p194, %s193, 7
        %s196 = smul.addr %s195, 2
        %s197 = smul.addr %s196, 8
        %s198 = scalar_lea.vmem %s1, %s197
        %p199 = pneg %p65
        %p200 = pneg %p62
        %p201 = pneg %p86
        %p202 = pneg %p83
        %p203 = pneg %p107
        %p204 = pneg %p104
        %p205 = pneg %p133
        %p206 = pneg %p130
        %s207 = sand.u32 %s120, 1
        %s208 = scalar_lea.sflag [#allocation4], %s207
        %s209 = sand.u32 %s120, 1
        %s210 = smul.addr %s209, 64
        %s211 = scalar_lea.vmem [#allocation3], %s210
        %s212 = smul.u32 4, %s18
        %p213 = scmp.lt.s32.totalorder %s212, 7
        %s214 = scalar_select %p213, %s212, 7
        %s215 = smul.addr %s214, 2
        %s216 = smul.addr %s215, 8
        %s217 = scalar_lea.vmem %s0, %s216
        %s218 = smul.u32 4, %s18
        %s219 = smul.u32 4, %s18
        %p220 = scmp.lt.s32.totalorder %s219, 7
        %s221 = scalar_select %p220, %s219, 7
        %s222 = smul.addr %s221, 2
        %s223 = smul.addr %s222, 8
        %s224 = scalar_lea.vmem %s1, %s223
        %s225 = smul.u32 4, %s18
        %s226 = smul.u32 4, %s18
        %v227 = vld [vmem:[%s217] sm:$0xff]
        %v228 = vld [vmem:[%s217 + $0x8] sm:$0xff]
        %v229 = vld [vmem:[%s217 + $0x10] sm:$0xff]
        %v230 = vld [vmem:[%s217 + $0x18] sm:$0xff]
        %v231 = vld [vmem:[%s217 + $0x20] sm:$0xff]
        %v232 = vld [vmem:[%s217 + $0x28] sm:$0xff]
        %v233 = vld [vmem:[%s217 + $0x30] sm:$0xff]
        %v234 = vld [vmem:[%s217 + $0x38] sm:$0xff]
        %vm235 = vcmask 64512
        %236 = vst.msk [vmem:[#allocation2] sm:$0xff] %vm235, %v227
        %237 = vst.msk [vmem:[#allocation2 + $0x8] sm:$0xff] %vm235, %v228
        %238 = vst.msk [vmem:[#allocation2 + $0x10] sm:$0xff] %vm235, %v229
        %239 = vst.msk [vmem:[#allocation2 + $0x18] sm:$0xff] %vm235, %v230
        %240 = vst.msk [vmem:[#allocation2 + $0x20] sm:$0xff] %vm235, %v231
        %241 = vst.msk [vmem:[#allocation2 + $0x28] sm:$0xff] %vm235, %v232
        %242 = vst.msk [vmem:[#allocation2 + $0x30] sm:$0xff] %vm235, %v233
        %243 = vst.msk [vmem:[#allocation2 + $0x38] sm:$0xff] %vm235, %v234
        %v244 = vmul.f32 %v227, 0.05
        %v245 = vmul.f32 %v228, 0.05
        %v246 = vmul.f32 %v229, 0.05
        %v247 = vmul.f32 %v230, 0.05
        %v248 = vmul.f32 %v231, 0.05
        %v249 = vmul.f32 %v232, 0.05
        %v250 = vmul.f32 %v233, 0.05
        %v251 = vmul.f32 %v234, 0.05
        %v252 = vld [vmem:[%s224] sm:$0xff]
        %v253 = vld [vmem:[%s224 + $0x8] sm:$0xff]
        %v254 = vld [vmem:[%s224 + $0x10] sm:$0xff]
        %v255 = vld [vmem:[%s224 + $0x18] sm:$0xff]
        %v256 = vld [vmem:[%s224 + $0x20] sm:$0xff]
        %v257 = vld [vmem:[%s224 + $0x28] sm:$0xff]
        %v258 = vld [vmem:[%s224 + $0x30] sm:$0xff]
        %v259 = vld [vmem:[%s224 + $0x38] sm:$0xff]
        %v260 = vmul.f32 %v252, 0.95
        %v261 = vmul.f32 %v253, 0.95
        %v262 = vmul.f32 %v254, 0.95
        %v263 = vmul.f32 %v255, 0.95
        %v264 = vmul.f32 %v256, 0.95
        %v265 = vmul.f32 %v257, 0.95
        %v266 = vmul.f32 %v258, 0.95
        %v267 = vmul.f32 %v259, 0.95
        %vm268 = vcmask 130048
        %v270 = vsel %vm268, %v260, 0
        %v273 = vsel %vm268, %v261, 0
        %275 = vmatprep.subr.mxu0 0.0
        %276 = vmatpush1.msra.mxu0 %v227
        %277 = vmatprep.subr.mxu0 0.0
        %278 = vmatpush1.msra.mxu0 %v228
        %279 = vmatprep.subr.mxu0 0.0
        %280 = vmatpush1.msra.mxu0 0.0
        %281 = vmatprep.subr.mxu0 0.0
        %282 = vmatpush1.msra.mxu0 0.0
        %283 = vmatprep.subr.mxu0 0.0
        %284 = vmatpush1.msra.mxu0 0.0
        %285 = vmatprep.subr.mxu0 0.0
        %286 = vmatpush1.msra.mxu0 0.0
        %287 = vmatprep.subr.mxu0 0.0
        %288 = vmatpush1.msra.mxu0 0.0
        %289 = vmatprep.subr.mxu0 0.0
        %290 = vmatpush1.msra.mxu0 0.0
        %291 = vmatprep.subr.mxu0 0.0
        %292 = vmatpush1.msra.mxu0 0.0
        %293 = vmatprep.subr.mxu0 0.0
        %294 = vmatpush1.msra.mxu0 0.0
        %295 = vmatprep.subr.mxu0 0.0
        %296 = vmatpush1.msra.mxu0 0.0
        %297 = vmatprep.subr.mxu0 0.0
        %298 = vmatpush1.msra.mxu0 0.0
        %299 = vmatprep.subr.mxu0 0.0
        %300 = vmatpush1.msra.mxu0 0.0
        %301 = vmatprep.subr.mxu0 0.0
        %302 = vmatpush1.msra.mxu0 0.0
        %303 = vmatprep.subr.mxu0 0.0
        %304 = vmatpush1.msra.mxu0 0.0
        %305 = vmatprep.subr.mxu0 0.0
        %306 = vmatpush1.msra.mxu0 0.0
        %307 = vmatprep.subr.mxu0 0.0
        %308 = vmatpush1.msra.mxu0 0.0
        %309 = vmatprep.subr.mxu0 0.0
        %310 = vmatpush1.msra.mxu0 0.0
        %311 = vmatprep.subr.mxu0 0.0
        %312 = vmatpush1.msra.mxu0 0.0
        %313 = vmatprep.subr.mxu0 0.0
        %314 = vmatpush1.msra.mxu0 0.0
        %315 = vmatprep.subr.mxu0 0.0
        %316 = vmatpush1.msra.mxu0 0.0
        %317 = vmatprep.subr.mxu0 0.0
        %318 = vmatpush1.msra.mxu0 0.0
        %319 = vmatprep.subr.mxu0 0.0
        %320 = vmatpush1.msra.mxu0 0.0
        %321 = vmatprep.subr.mxu0 0.0
        %322 = vmatpush1.msra.mxu0 0.0
        %323 = vmatprep.subr.mxu0 0.0
        %324 = vmatpush1.msra.mxu0 0.0
        %325 = vmatprep.subr.mxu0 0.0
        %326 = vmatpush1.msra.mxu0 0.0
        %327 = vmatprep.subr.mxu0 0.0
        %328 = vmatpush1.msra.mxu0 0.0
        %329 = vmatprep.subr.mxu0 0.0
        %330 = vmatpush1.msra.mxu0 0.0
        %331 = vmatprep.subr.mxu0 0.0
        %332 = vmatpush1.msra.mxu0 0.0
        %333 = vmatprep.subr.mxu0 0.0
        %334 = vmatpush1.msra.mxu0 0.0
        %335 = vmatprep.subr.mxu0 0.0
        %336 = vmatpush1.msra.mxu0 0.0
        %337 = vmatprep.subr.mxu0 0.0
        %338 = vmatpush1.msra.mxu0 0.0
        %339 = vmatprep.mubr.f32.mxu0 0.0
        %340 = vmatmul.mubr.f32.gmra.mrb[0].mxu0 %v270
        %v341 = vpop.f32.mrb[0].mxu0
        %v342 = vadd.f32 0.0, %v341
        %v343 = vpop.f32.mrb[0].mxu0
        %344 = vmatprep.mubr.f32.mxu0 0.0
        %345 = vmatmul.mubr.f32.gmra.mrb[0].mxu0 %v273
        %v346 = vpop.f32.mrb[0].mxu0
        %v347 = vadd.f32 0.0, %v346
        %v348 = vpop.f32.mrb[0].mxu0
        %349 = vdwg.mxu0
        %v351 = vsel %vm268, %v262, 0
        %v354 = vsel %vm268, %v263, 0
        %356 = vmatprep.subr.mxu0 0.0
        %357 = vmatpush1.msra.mxu0 %v229
        %358 = vmatprep.subr.mxu0 0.0
        %359 = vmatpush1.msra.mxu0 %v230
        %360 = vmatprep.subr.mxu0 0.0
        %361 = vmatpush1.msra.mxu0 0.0
        %362 = vmatprep.subr.mxu0 0.0
        %363 = vmatpush1.msra.mxu0 0.0
        %364 = vmatprep.subr.mxu0 0.0
        %365 = vmatpush1.msra.mxu0 0.0
        %366 = vmatprep.subr.mxu0 0.0
        %367 = vmatpush1.msra.mxu0 0.0
        %368 = vmatprep.subr.mxu0 0.0
        %369 = vmatpush1.msra.mxu0 0.0
        %370 = vmatprep.subr.mxu0 0.0
        %371 = vmatpush1.msra.mxu0 0.0
        %372 = vmatprep.subr.mxu0 0.0
        %373 = vmatpush1.msra.mxu0 0.0
        %374 = vmatprep.subr.mxu0 0.0
        %375 = vmatpush1.msra.mxu0 0.0
        %376 = vmatprep.subr.mxu0 0.0
        %377 = vmatpush1.msra.mxu0 0.0
        %378 = vmatprep.subr.mxu0 0.0
        %379 = vmatpush1.msra.mxu0 0.0
        %380 = vmatprep.subr.mxu0 0.0
        %381 = vmatpush1.msra.mxu0 0.0
        %382 = vmatprep.subr.mxu0 0.0
        %383 = vmatpush1.msra.mxu0 0.0
        %384 = vmatprep.subr.mxu0 0.0
        %385 = vmatpush1.msra.mxu0 0.0
        %386 = vmatprep.subr.mxu0 0.0
        %387 = vmatpush1.msra.mxu0 0.0
        %388 = vmatprep.subr.mxu0 0.0
        %389 = vmatpush1.msra.mxu0 0.0
        %390 = vmatprep.subr.mxu0 0.0
        %391 = vmatpush1.msra.mxu0 0.0
        %392 = vmatprep.subr.mxu0 0.0
        %393 = vmatpush1.msra.mxu0 0.0
        %394 = vmatprep.subr.mxu0 0.0
        %395 = vmatpush1.msra.mxu0 0.0
        %396 = vmatprep.subr.mxu0 0.0
        %397 = vmatpush1.msra.mxu0 0.0
        %398 = vmatprep.subr.mxu0 0.0
        %399 = vmatpush1.msra.mxu0 0.0
        %400 = vmatprep.subr.mxu0 0.0
        %401 = vmatpush1.msra.mxu0 0.0
        %402 = vmatprep.subr.mxu0 0.0
        %403 = vmatpush1.msra.mxu0 0.0
        %404 = vmatprep.subr.mxu0 0.0
        %405 = vmatpush1.msra.mxu0 0.0
        %406 = vmatprep.subr.mxu0 0.0
        %407 = vmatpush1.msra.mxu0 0.0
        %408 = vmatprep.subr.mxu0 0.0
        %409 = vmatpush1.msra.mxu0 0.0
        %410 = vmatprep.subr.mxu0 0.0
        %411 = vmatpush1.msra.mxu0 0.0
        %412 = vmatprep.subr.mxu0 0.0
        %413 = vmatpush1.msra.mxu0 0.0
        %414 = vmatprep.subr.mxu0 0.0
        %415 = vmatpush1.msra.mxu0 0.0
        %416 = vmatprep.subr.mxu0 0.0
        %417 = vmatpush1.msra.mxu0 0.0
        %418 = vmatprep.subr.mxu0 0.0
        %419 = vmatpush1.msra.mxu0 0.0
        %420 = vmatprep.mubr.f32.mxu0 0.0
        %421 = vmatmul.mubr.f32.gmra.mrb[0].mxu0 %v351
        %v422 = vpop.f32.mrb[0].mxu0
        %v423 = vadd.f32 0.0, %v422
        %v424 = vpop.f32.mrb[0].mxu0
        %425 = vmatprep.mubr.f32.mxu0 0.0
        %426 = vmatmul.mubr.f32.gmra.mrb[0].mxu0 %v354
        %v427 = vpop.f32.mrb[0].mxu0
        %v428 = vadd.f32 0.0, %v427
        %v429 = vpop.f32.mrb[0].mxu0
        %430 = vdwg.mxu0
        %v432 = vsel %vm268, %v264, 0
        %v435 = vsel %vm268, %v265, 0
        %437 = vmatprep.subr.mxu0 0.0
        %438 = vmatpush1.msra.mxu0 %v231
        %439 = vmatprep.subr.mxu0 0.0
        %440 = vmatpush1.msra.mxu0 %v232
        %441 = vmatprep.subr.mxu0 0.0
        %442 = vmatpush1.msra.mxu0 0.0
        %443 = vmatprep.subr.mxu0 0.0
        %444 = vmatpush1.msra.mxu0 0.0
        %445 = vmatprep.subr.mxu0 0.0
        %446 = vmatpush1.msra.mxu0 0.0
        %447 = vmatprep.subr.mxu0 0.0
        %448 = vmatpush1.msra.mxu0 0.0
        %449 = vmatprep.subr.mxu0 0.0
        %450 = vmatpush1.msra.mxu0 0.0
        %451 = vmatprep.subr.mxu0 0.0
        %452 = vmatpush1.msra.mxu0 0.0
        %453 = vmatprep.subr.mxu0 0.0
        %454 = vmatpush1.msra.mxu0 0.0
        %455 = vmatprep.subr.mxu0 0.0
        %456 = vmatpush1.msra.mxu0 0.0
        %457 = vmatprep.subr.mxu0 0.0
        %458 = vmatpush1.msra.mxu0 0.0
        %459 = vmatprep.subr.mxu0 0.0
        %460 = vmatpush1.msra.mxu0 0.0
        %461 = vmatprep.subr.mxu0 0.0
        %462 = vmatpush1.msra.mxu0 0.0
        %463 = vmatprep.subr.mxu0 0.0
        %464 = vmatpush1.msra.mxu0 0.0
        %465 = vmatprep.subr.mxu0 0.0
        %466 = vmatpush1.msra.mxu0 0.0
        %467 = vmatprep.subr.mxu0 0.0
        %468 = vmatpush1.msra.mxu0 0.0
        %469 = vmatprep.subr.mxu0 0.0
        %470 = vmatpush1.msra.mxu0 0.0
        %471 = vmatprep.subr.mxu0 0.0
        %472 = vmatpush1.msra.mxu0 0.0
        %473 = vmatprep.subr.mxu0 0.0
        %474 = vmatpush1.msra.mxu0 0.0
        %475 = vmatprep.subr.mxu0 0.0
        %476 = vmatpush1.msra.mxu0 0.0
        %477 = vmatprep.subr.mxu0 0.0
        %478 = vmatpush1.msra.mxu0 0.0
        %479 = vmatprep.subr.mxu0 0.0
        %480 = vmatpush1.msra.mxu0 0.0
        %481 = vmatprep.subr.mxu0 0.0
        %482 = vmatpush1.msra.mxu0 0.0
        %483 = vmatprep.subr.mxu0 0.0
        %484 = vmatpush1.msra.mxu0 0.0
        %485 = vmatprep.subr.mxu0 0.0
        %486 = vmatpush1.msra.mxu0 0.0
        %487 = vmatprep.subr.mxu0 0.0
        %488 = vmatpush1.msra.mxu0 0.0
        %489 = vmatprep.subr.mxu0 0.0
        %490 = vmatpush1.msra.mxu0 0.0
        %491 = vmatprep.subr.mxu0 0.0
        %492 = vmatpush1.msra.mxu0 0.0
        %493 = vmatprep.subr.mxu0 0.0
        %494 = vmatpush1.msra.mxu0 0.0
        %495 = vmatprep.subr.mxu0 0.0
        %496 = vmatpush1.msra.mxu0 0.0
        %497 = vmatprep.subr.mxu0 0.0
        %498 = vmatpush1.msra.mxu0 0.0
        %499 = vmatprep.subr.mxu0 0.0
        %500 = vmatpush1.msra.mxu0 0.0
        %501 = vmatprep.mubr.f32.mxu0 0.0
        %502 = vmatmul.mubr.f32.gmra.mrb[0].mxu0 %v432
        %v503 = vpop.f32.mrb[0].mxu0
        %v504 = vadd.f32 0.0, %v503
        %v505 = vpop.f32.mrb[0].mxu0
        %506 = vmatprep.mubr.f32.mxu0 0.0
        %507 = vmatmul.mubr.f32.gmra.mrb[0].mxu0 %v435
        %v508 = vpop.f32.mrb[0].mxu0
        %v509 = vadd.f32 0.0, %v508
        %v510 = vpop.f32.mrb[0].mxu0
        %511 = vdwg.mxu0
        %v513 = vsel %vm268, %v266, 0
        %v516 = vsel %vm268, %v267, 0
        %518 = vmatprep.subr.mxu0 0.0
        %519 = vmatpush1.msra.mxu0 %v233
        %520 = vmatprep.subr.mxu0 0.0
        %521 = vmatpush1.msra.mxu0 %v234
        %522 = vmatprep.subr.mxu0 0.0
        %523 = vmatpush1.msra.mxu0 0.0
        %524 = vmatprep.subr.mxu0 0.0
        %525 = vmatpush1.msra.mxu0 0.0
        %526 = vmatprep.subr.mxu0 0.0
        %527 = vmatpush1.msra.mxu0 0.0
        %528 = vmatprep.subr.mxu0 0.0
        %529 = vmatpush1.msra.mxu0 0.0
        %530 = vmatprep.subr.mxu0 0.0
        %531 = vmatpush1.msra.mxu0 0.0
        %532 = vmatprep.subr.mxu0 0.0
        %533 = vmatpush1.msra.mxu0 0.0
        %534 = vmatprep.subr.mxu0 0.0
        %535 = vmatpush1.msra.mxu0 0.0
        %536 = vmatprep.subr.mxu0 0.0
        %537 = vmatpush1.msra.mxu0 0.0
        %538 = vmatprep.subr.mxu0 0.0
        %539 = vmatpush1.msra.mxu0 0.0
        %540 = vmatprep.subr.mxu0 0.0
        %541 = vmatpush1.msra.mxu0 0.0
        %542 = vmatprep.subr.mxu0 0.0
        %543 = vmatpush1.msra.mxu0 0.0
        %544 = vmatprep.subr.mxu0 0.0
        %545 = vmatpush1.msra.mxu0 0.0
        %546 = vmatprep.subr.mxu0 0.0
        %547 = vmatpush1.msra.mxu0 0.0
        %548 = vmatprep.subr.mxu0 0.0
        %549 = vmatpush1.msra.mxu0 0.0
        %550 = vmatprep.subr.mxu0 0.0
        %551 = vmatpush1.msra.mxu0 0.0
        %552 = vmatprep.subr.mxu0 0.0
        %553 = vmatpush1.msra.mxu0 0.0
        %554 = vmatprep.subr.mxu0 0.0
        %555 = vmatpush1.msra.mxu0 0.0
        %556 = vmatprep.subr.mxu0 0.0
        %557 = vmatpush1.msra.mxu0 0.0
        %558 = vmatprep.subr.mxu0 0.0
        %559 = vmatpush1.msra.mxu0 0.0
        %560 = vmatprep.subr.mxu0 0.0
        %561 = vmatpush1.msra.mxu0 0.0
        %562 = vmatprep.subr.mxu0 0.0
        %563 = vmatpush1.msra.mxu0 0.0
        %564 = vmatprep.subr.mxu0 0.0
        %565 = vmatpush1.msra.mxu0 0.0
        %566 = vmatprep.subr.mxu0 0.0
        %567 = vmatpush1.msra.mxu0 0.0
        %568 = vmatprep.subr.mxu0 0.0
        %569 = vmatpush1.msra.mxu0 0.0
        %570 = vmatprep.subr.mxu0 0.0
        %571 = vmatpush1.msra.mxu0 0.0
        %572 = vmatprep.subr.mxu0 0.0
        %573 = vmatpush1.msra.mxu0 0.0
        %574 = vmatprep.subr.mxu0 0.0
        %575 = vmatpush1.msra.mxu0 0.0
        %576 = vmatprep.subr.mxu0 0.0
        %577 = vmatpush1.msra.mxu0 0.0
        %578 = vmatprep.subr.mxu0 0.0
        %579 = vmatpush1.msra.mxu0 0.0
        %580 = vmatprep.subr.mxu0 0.0
        %581 = vmatpush1.msra.mxu0 0.0
        %582 = vmatprep.mubr.f32.mxu0 0.0
        %583 = vmatmul.mubr.f32.gmra.mrb[0].mxu0 %v513
        %v584 = vpop.f32.mrb[0].mxu0
        %v585 = vadd.f32 0.0, %v584
        %v586 = vpop.f32.mrb[0].mxu0
        %587 = vmatprep.mubr.f32.mxu0 0.0
        %588 = vmatmul.mubr.f32.gmra.mrb[0].mxu0 %v516
        %v589 = vpop.f32.mrb[0].mxu0
        %v590 = vadd.f32 0.0, %v589
        %v591 = vpop.f32.mrb[0].mxu0
        %592 = vdwg.mxu0
        %v593 = vadd.f32 %v244, %v342
        %v594 = vadd.f32 %v245, %v347
        %v595 = vadd.f32 %v246, %v423
        %v596 = vadd.f32 %v247, %v428
        %v597 = vadd.f32 %v248, %v504
        %v598 = vadd.f32 %v249, %v509
        %v599 = vadd.f32 %v250, %v585
        %v600 = vadd.f32 %v251, %v590
        %609 = vrot.lane.b32.xlu0 %v593, 8
        %v610 = vpop.permute.xlu0 %609
        %611 = vrot.lane.b32.xlu0 %v594, 8
        %v612 = vpop.permute.xlu0 %611
        %613 = vrot.lane.b32.xlu0 %v595, 8
        %v614 = vpop.permute.xlu0 %613
        %615 = vrot.lane.b32.xlu0 %v596, 8
        %v616 = vpop.permute.xlu0 %615
        %617 = vrot.lane.b32.xlu0 %v597, 8
        %v618 = vpop.permute.xlu0 %617
        %619 = vrot.lane.b32.xlu0 %v598, 8
        %v620 = vpop.permute.xlu0 %619
        %621 = vrot.lane.b32.xlu0 %v599, 8
        %v622 = vpop.permute.xlu0 %621
        %623 = vrot.lane.b32.xlu0 %v600, 8
        %v624 = vpop.permute.xlu0 %623
        %vm633 = vcmask 130112
        %634 = vst.msk [vmem:[#allocation2] sm:$0xff] %vm633, %v610
        %635 = vst.msk [vmem:[#allocation2 + $0x8] sm:$0xff] %vm633, %v612
        %636 = vst.msk [vmem:[#allocation2 + $0x10] sm:$0xff] %vm633, %v614
        %637 = vst.msk [vmem:[#allocation2 + $0x18] sm:$0xff] %vm633, %v616
        %638 = vst.msk [vmem:[#allocation2 + $0x20] sm:$0xff] %vm633, %v618
        %639 = vst.msk [vmem:[#allocation2 + $0x28] sm:$0xff] %vm633, %v620
        %640 = vst.msk [vmem:[#allocation2 + $0x30] sm:$0xff] %vm633, %v622
        %641 = vst.msk [vmem:[#allocation2 + $0x38] sm:$0xff] %vm633, %v624
        %642 = vmatprep.subr.mxu0 0.0
        %643 = vmatpush1.msra.mxu0 %v593
        %644 = vmatprep.subr.mxu0 0.0
        %645 = vmatpush1.msra.mxu0 %v594
        %646 = vmatprep.subr.mxu0 0.0
        %647 = vmatpush1.msra.mxu0 0.0
        %648 = vmatprep.subr.mxu0 0.0
        %649 = vmatpush1.msra.mxu0 0.0
        %650 = vmatprep.subr.mxu0 0.0
        %651 = vmatpush1.msra.mxu0 0.0
        %652 = vmatprep.subr.mxu0 0.0
        %653 = vmatpush1.msra.mxu0 0.0
        %654 = vmatprep.subr.mxu0 0.0
        %655 = vmatpush1.msra.mxu0 0.0
        %656 = vmatprep.subr.mxu0 0.0
        %657 = vmatpush1.msra.mxu0 0.0
        %658 = vmatprep.subr.mxu0 0.0
        %659 = vmatpush1.msra.mxu0 0.0
        %660 = vmatprep.subr.mxu0 0.0
        %661 = vmatpush1.msra.mxu0 0.0
        %662 = vmatprep.subr.mxu0 0.0
        %663 = vmatpush1.msra.mxu0 0.0
        %664 = vmatprep.subr.mxu0 0.0
        %665 = vmatpush1.msra.mxu0 0.0
        %666 = vmatprep.subr.mxu0 0.0
        %667 = vmatpush1.msra.mxu0 0.0
        %668 = vmatprep.subr.mxu0 0.0
        %669 = vmatpush1.msra.mxu0 0.0
        %670 = vmatprep.subr.mxu0 0.0
        %671 = vmatpush1.msra.mxu0 0.0
        %672 = vmatprep.subr.mxu0 0.0
        %673 = vmatpush1.msra.mxu0 0.0
        %674 = vmatprep.subr.mxu0 0.0
        %675 = vmatpush1.msra.mxu0 0.0
        %676 = vmatprep.subr.mxu0 0.0
        %677 = vmatpush1.msra.mxu0 0.0
        %678 = vmatprep.subr.mxu0 0.0
        %679 = vmatpush1.msra.mxu0 0.0
        %680 = vmatprep.subr.mxu0 0.0
        %681 = vmatpush1.msra.mxu0 0.0
        %682 = vmatprep.subr.mxu0 0.0
        %683 = vmatpush1.msra.mxu0 0.0
        %684 = vmatprep.subr.mxu0 0.0
        %685 = vmatpush1.msra.mxu0 0.0
        %686 = vmatprep.subr.mxu0 0.0
        %687 = vmatpush1.msra.mxu0 0.0
        %688 = vmatprep.subr.mxu0 0.0
        %689 = vmatpush1.msra.mxu0 0.0
        %690 = vmatprep.subr.mxu0 0.0
        %691 = vmatpush1.msra.mxu0 0.0
        %692 = vmatprep.subr.mxu0 0.0
        %693 = vmatpush1.msra.mxu0 0.0
        %694 = vmatprep.subr.mxu0 0.0
        %695 = vmatpush1.msra.mxu0 0.0
        %696 = vmatprep.subr.mxu0 0.0
        %697 = vmatpush1.msra.mxu0 0.0
        %698 = vmatprep.subr.mxu0 0.0
        %699 = vmatpush1.msra.mxu0 0.0
        %700 = vmatprep.subr.mxu0 0.0
        %701 = vmatpush1.msra.mxu0 0.0
        %702 = vmatprep.subr.mxu0 0.0
        %703 = vmatpush1.msra.mxu0 0.0
        %704 = vmatprep.subr.mxu0 0.0
        %705 = vmatpush1.msra.mxu0 0.0
        %706 = vmatprep.mubr.f32.mxu0 0.0
        %707 = vmatmul.mubr.f32.gmra.mrb[0].mxu0 %v270
        %v708 = vpop.f32.mrb[0].mxu0
        %v709 = vadd.f32 0.0, %v708
        %v710 = vpop.f32.mrb[0].mxu0
        %711 = vmatprep.mubr.f32.mxu0 0.0
        %712 = vmatmul.mubr.f32.gmra.mrb[0].mxu0 %v273
        %v713 = vpop.f32.mrb[0].mxu0
        %v714 = vadd.f32 0.0, %v713
        %v715 = vpop.f32.mrb[0].mxu0
        %716 = vdwg.mxu0
        %717 = vmatprep.subr.mxu0 0.0
        %718 = vmatpush1.msra.mxu0 %v595
        %719 = vmatprep.subr.mxu0 0.0
        %720 = vmatpush1.msra.mxu0 %v596
        %721 = vmatprep.subr.mxu0 0.0
        %722 = vmatpush1.msra.mxu0 0.0
        %723 = vmatprep.subr.mxu0 0.0
        %724 = vmatpush1.msra.mxu0 0.0
        %725 = vmatprep.subr.mxu0 0.0
        %726 = vmatpush1.msra.mxu0 0.0
        %727 = vmatprep.subr.mxu0 0.0
        %728 = vmatpush1.msra.mxu0 0.0
        %729 = vmatprep.subr.mxu0 0.0
        %730 = vmatpush1.msra.mxu0 0.0
        %731 = vmatprep.subr.mxu0 0.0
        %732 = vmatpush1.msra.mxu0 0.0
        %733 = vmatprep.subr.mxu0 0.0
        %734 = vmatpush1.msra.mxu0 0.0
        %735 = vmatprep.subr.mxu0 0.0
        %736 = vmatpush1.msra.mxu0 0.0
        %737 = vmatprep.subr.mxu0 0.0
        %738 = vmatpush1.msra.mxu0 0.0
        %739 = vmatprep.subr.mxu0 0.0
        %740 = vmatpush1.msra.mxu0 0.0
        %741 = vmatprep.subr.mxu0 0.0
        %742 = vmatpush1.msra.mxu0 0.0
        %743 = vmatprep.subr.mxu0 0.0
        %744 = vmatpush1.msra.mxu0 0.0
        %745 = vmatprep.subr.mxu0 0.0
        %746 = vmatpush1.msra.mxu0 0.0
        %747 = vmatprep.subr.mxu0 0.0
        %748 = vmatpush1.msra.mxu0 0.0
        %749 = vmatprep.subr.mxu0 0.0
        %750 = vmatpush1.msra.mxu0 0.0
        %751 = vmatprep.subr.mxu0 0.0
        %752 = vmatpush1.msra.mxu0 0.0
        %753 = vmatprep.subr.mxu0 0.0
        %754 = vmatpush1.msra.mxu0 0.0
        %755 = vmatprep.subr.mxu0 0.0
        %756 = vmatpush1.msra.mxu0 0.0
        %757 = vmatprep.subr.mxu0 0.0
        %758 = vmatpush1.msra.mxu0 0.0
        %759 = vmatprep.subr.mxu0 0.0
        %760 = vmatpush1.msra.mxu0 0.0
        %761 = vmatprep.subr.mxu0 0.0
        %762 = vmatpush1.msra.mxu0 0.0
        %763 = vmatprep.subr.mxu0 0.0
        %764 = vmatpush1.msra.mxu0 0.0
        %765 = vmatprep.subr.mxu0 0.0
        %766 = vmatpush1.msra.mxu0 0.0
        %767 = vmatprep.subr.mxu0 0.0
        %768 = vmatpush1.msra.mxu0 0.0
        %769 = vmatprep.subr.mxu0 0.0
        %770 = vmatpush1.msra.mxu0 0.0
        %771 = vmatprep.subr.mxu0 0.0
        %772 = vmatpush1.msra.mxu0 0.0
        %773 = vmatprep.subr.mxu0 0.0
        %774 = vmatpush1.msra.mxu0 0.0
        %775 = vmatprep.subr.mxu0 0.0
        %776 = vmatpush1.msra.mxu0 0.0
        %777 = vmatprep.subr.mxu0 0.0
        %778 = vmatpush1.msra.mxu0 0.0
        %779 = vmatprep.subr.mxu0 0.0
        %780 = vmatpush1.msra.mxu0 0.0
        %781 = vmatprep.mubr.f32.mxu0 0.0
        %782 = vmatmul.mubr.f32.gmra.mrb[0].mxu0 %v351
        %v783 = vpop.f32.mrb[0].mxu0
        %v784 = vadd.f32 0.0, %v783
        %v785 = vpop.f32.mrb[0].mxu0
        %786 = vmatprep.mubr.f32.mxu0 0.0
        %787 = vmatmul.mubr.f32.gmra.mrb[0].mxu0 %v354
        %v788 = vpop.f32.mrb[0].mxu0
        %v789 = vadd.f32 0.0, %v788
        %v790 = vpop.f32.mrb[0].mxu0
        %791 = vdwg.mxu0
        %792 = vmatprep.subr.mxu0 0.0
        %793 = vmatpush1.msra.mxu0 %v597
        %794 = vmatprep.subr.mxu0 0.0
        %795 = vmatpush1.msra.mxu0 %v598
        %796 = vmatprep.subr.mxu0 0.0
        %797 = vmatpush1.msra.mxu0 0.0
        %798 = vmatprep.subr.mxu0 0.0
        %799 = vmatpush1.msra.mxu0 0.0
        %800 = vmatprep.subr.mxu0 0.0
        %801 = vmatpush1.msra.mxu0 0.0
        %802 = vmatprep.subr.mxu0 0.0
        %803 = vmatpush1.msra.mxu0 0.0
        %804 = vmatprep.subr.mxu0 0.0
        %805 = vmatpush1.msra.mxu0 0.0
        %806 = vmatprep.subr.mxu0 0.0
        %807 = vmatpush1.msra.mxu0 0.0
        %808 = vmatprep.subr.mxu0 0.0
        %809 = vmatpush1.msra.mxu0 0.0
        %810 = vmatprep.subr.mxu0 0.0
        %811 = vmatpush1.msra.mxu0 0.0
        %812 = vmatprep.subr.mxu0 0.0
        %813 = vmatpush1.msra.mxu0 0.0
        %814 = vmatprep.subr.mxu0 0.0
        %815 = vmatpush1.msra.mxu0 0.0
        %816 = vmatprep.subr.mxu0 0.0
        %817 = vmatpush1.msra.mxu0 0.0
        %818 = vmatprep.subr.mxu0 0.0
        %819 = vmatpush1.msra.mxu0 0.0
        %820 = vmatprep.subr.mxu0 0.0
        %821 = vmatpush1.msra.mxu0 0.0
        %822 = vmatprep.subr.mxu0 0.0
        %823 = vmatpush1.msra.mxu0 0.0
        %824 = vmatprep.subr.mxu0 0.0
        %825 = vmatpush1.msra.mxu0 0.0
        %826 = vmatprep.subr.mxu0 0.0
        %827 = vmatpush1.msra.mxu0 0.0
        %828 = vmatprep.subr.mxu0 0.0
        %829 = vmatpush1.msra.mxu0 0.0
        %830 = vmatprep.subr.mxu0 0.0
        %831 = vmatpush1.msra.mxu0 0.0
        %832 = vmatprep.subr.mxu0 0.0
        %833 = vmatpush1.msra.mxu0 0.0
        %834 = vmatprep.subr.mxu0 0.0
        %835 = vmatpush1.msra.mxu0 0.0
        %836 = vmatprep.subr.mxu0 0.0
        %837 = vmatpush1.msra.mxu0 0.0
        %838 = vmatprep.subr.mxu0 0.0
        %839 = vmatpush1.msra.mxu0 0.0
        %840 = vmatprep.subr.mxu0 0.0
        %841 = vmatpush1.msra.mxu0 0.0
        %842 = vmatprep.subr.mxu0 0.0
        %843 = vmatpush1.msra.mxu0 0.0
        %844 = vmatprep.subr.mxu0 0.0
        %845 = vmatpush1.msra.mxu0 0.0
        %846 = vmatprep.subr.mxu0 0.0
        %847 = vmatpush1.msra.mxu0 0.0
        %848 = vmatprep.subr.mxu0 0.0
        %849 = vmatpush1.msra.mxu0 0.0
        %850 = vmatprep.subr.mxu0 0.0
        %851 = vmatpush1.msra.mxu0 0.0
        %852 = vmatprep.subr.mxu0 0.0
        %853 = vmatpush1.msra.mxu0 0.0
        %854 = vmatprep.subr.mxu0 0.0
        %855 = vmatpush1.msra.mxu0 0.0
        %856 = vmatprep.mubr.f32.mxu0 0.0
        %857 = vmatmul.mubr.f32.gmra.mrb[0].mxu0 %v432
        %v858 = vpop.f32.mrb[0].mxu0
        %v859 = vadd.f32 0.0, %v858
        %v860 = vpop.f32.mrb[0].mxu0
        %861 = vmatprep.mubr.f32.mxu0 0.0
        %862 = vmatmul.mubr.f32.gmra.mrb[0].mxu0 %v435
        %v863 = vpop.f32.mrb[0].mxu0
        %v864 = vadd.f32 0.0, %v863
        %v865 = vpop.f32.mrb[0].mxu0
        %866 = vdwg.mxu0
        %867 = vmatprep.subr.mxu0 0.0
        %868 = vmatpush1.msra.mxu0 %v599
        %869 = vmatprep.subr.mxu0 0.0
        %870 = vmatpush1.msra.mxu0 %v600
        %871 = vmatprep.subr.mxu0 0.0
        %872 = vmatpush1.msra.mxu0 0.0
        %873 = vmatprep.subr.mxu0 0.0
        %874 = vmatpush1.msra.mxu0 0.0
        %875 = vmatprep.subr.mxu0 0.0
        %876 = vmatpush1.msra.mxu0 0.0
        %877 = vmatprep.subr.mxu0 0.0
        %878 = vmatpush1.msra.mxu0 0.0
        %879 = vmatprep.subr.mxu0 0.0
        %880 = vmatpush1.msra.mxu0 0.0
        %881 = vmatprep.subr.mxu0 0.0
        %882 = vmatpush1.msra.mxu0 0.0
        %883 = vmatprep.subr.mxu0 0.0
        %884 = vmatpush1.msra.mxu0 0.0
        %885 = vmatprep.subr.mxu0 0.0
        %886 = vmatpush1.msra.mxu0 0.0
        %887 = vmatprep.subr.mxu0 0.0
        %888 = vmatpush1.msra.mxu0 0.0
        %889 = vmatprep.subr.mxu0 0.0
        %890 = vmatpush1.msra.mxu0 0.0
        %891 = vmatprep.subr.mxu0 0.0
        %892 = vmatpush1.msra.mxu0 0.0
        %893 = vmatprep.subr.mxu0 0.0
        %894 = vmatpush1.msra.mxu0 0.0
        %895 = vmatprep.subr.mxu0 0.0
        %896 = vmatpush1.msra.mxu0 0.0
        %897 = vmatprep.subr.mxu0 0.0
        %898 = vmatpush1.msra.mxu0 0.0
        %899 = vmatprep.subr.mxu0 0.0
        %900 = vmatpush1.msra.mxu0 0.0
        %901 = vmatprep.subr.mxu0 0.0
        %902 = vmatpush1.msra.mxu0 0.0
        %903 = vmatprep.subr.mxu0 0.0
        %904 = vmatpush1.msra.mxu0 0.0
        %905 = vmatprep.subr.mxu0 0.0
        %906 = vmatpush1.msra.mxu0 0.0
        %907 = vmatprep.subr.mxu0 0.0
        %908 = vmatpush1.msra.mxu0 0.0
        %909 = vmatprep.subr.mxu0 0.0
        %910 = vmatpush1.msra.mxu0 0.0
        %911 = vmatprep.subr.mxu0 0.0
        %912 = vmatpush1.msra.mxu0 0.0
        %913 = vmatprep.subr.mxu0 0.0
        %914 = vmatpush1.msra.mxu0 0.0
        %915 = vmatprep.subr.mxu0 0.0
        %916 = vmatpush1.msra.mxu0 0.0
        %917 = vmatprep.subr.mxu0 0.0
        %918 = vmatpush1.msra.mxu0 0.0
        %919 = vmatprep.subr.mxu0 0.0
        %920 = vmatpush1.msra.mxu0 0.0
        %921 = vmatprep.subr.mxu0 0.0
        %922 = vmatpush1.msra.mxu0 0.0
        %923 = vmatprep.subr.mxu0 0.0
        %924 = vmatpush1.msra.mxu0 0.0
        %925 = vmatprep.subr.mxu0 0.0
        %926 = vmatpush1.msra.mxu0 0.0
        %927 = vmatprep.subr.mxu0 0.0
        %928 = vmatpush1.msra.mxu0 0.0
        %929 = vmatprep.subr.mxu0 0.0
        %930 = vmatpush1.msra.mxu0 0.0
        %931 = vmatprep.mubr.f32.mxu0 0.0
        %932 = vmatmul.mubr.f32.gmra.mrb[0].mxu0 %v513
        %v933 = vpop.f32.mrb[0].mxu0
        %v934 = vadd.f32 0.0, %v933
        %v935 = vpop.f32.mrb[0].mxu0
        %936 = vmatprep.mubr.f32.mxu0 0.0
        %937 = vmatmul.mubr.f32.gmra.mrb[0].mxu0 %v516
        %v938 = vpop.f32.mrb[0].mxu0
        %v939 = vadd.f32 0.0, %v938
        %v940 = vpop.f32.mrb[0].mxu0
        %941 = vdwg.mxu0
        %v942 = vadd.f32 %v244, %v709
        %v943 = vadd.f32 %v245, %v714
        %v944 = vadd.f32 %v246, %v784
        %v945 = vadd.f32 %v247, %v789
        %v946 = vadd.f32 %v248, %v859
        %v947 = vadd.f32 %v249, %v864
        %v948 = vadd.f32 %v250, %v934
        %v949 = vadd.f32 %v251, %v939
        %958 = vrot.lane.b32.xlu0 %v942, 16
        %v959 = vpop.permute.xlu0 %958
        %960 = vrot.lane.b32.xlu0 %v943, 16
        %v961 = vpop.permute.xlu0 %960
        %962 = vrot.lane.b32.xlu0 %v944, 16
        %v963 = vpop.permute.xlu0 %962
        %964 = vrot.lane.b32.xlu0 %v945, 16
        %v965 = vpop.permute.xlu0 %964
        %966 = vrot.lane.b32.xlu0 %v946, 16
        %v967 = vpop.permute.xlu0 %966
        %968 = vrot.lane.b32.xlu0 %v947, 16
        %v969 = vpop.permute.xlu0 %968
        %970 = vrot.lane.b32.xlu0 %v948, 16
        %v971 = vpop.permute.xlu0 %970
        %972 = vrot.lane.b32.xlu0 %v949, 16
        %v973 = vpop.permute.xlu0 %972
        %vm982 = vcmask 195712
        %983 = vst.msk [vmem:[#allocation2] sm:$0xff] %vm982, %v959
        %984 = vst.msk [vmem:[#allocation2 + $0x8] sm:$0xff] %vm982, %v961
        %985 = vst.msk [vmem:[#allocation2 + $0x10] sm:$0xff] %vm982, %v963
        %986 = vst.msk [vmem:[#allocation2 + $0x18] sm:$0xff] %vm982, %v965
        %987 = vst.msk [vmem:[#allocation2 + $0x20] sm:$0xff] %vm982, %v967
        %988 = vst.msk [vmem:[#allocation2 + $0x28] sm:$0xff] %vm982, %v969
        %989 = vst.msk [vmem:[#allocation2 + $0x30] sm:$0xff] %vm982, %v971
        %990 = vst.msk [vmem:[#allocation2 + $0x38] sm:$0xff] %vm982, %v973
        %991 = vmatprep.subr.mxu0 0.0
        %992 = vmatpush1.msra.mxu0 %v942
        %993 = vmatprep.subr.mxu0 0.0
        %994 = vmatpush1.msra.mxu0 %v943
        %995 = vmatprep.subr.mxu0 0.0
        %996 = vmatpush1.msra.mxu0 0.0
        %997 = vmatprep.subr.mxu0 0.0
        %998 = vmatpush1.msra.mxu0 0.0
        %999 = vmatprep.subr.mxu0 0.0
        %1000 = vmatpush1.msra.mxu0 0.0
        %1001 = vmatprep.subr.mxu0 0.0
        %1002 = vmatpush1.msra.mxu0 0.0
        %1003 = vmatprep.subr.mxu0 0.0
        %1004 = vmatpush1.msra.mxu0 0.0
        %1005 = vmatprep.subr.mxu0 0.0
        %1006 = vmatpush1.msra.mxu0 0.0
        %1007 = vmatprep.subr.mxu0 0.0
        %1008 = vmatpush1.msra.mxu0 0.0
        %1009 = vmatprep.subr.mxu0 0.0
        %1010 = vmatpush1.msra.mxu0 0.0
        %1011 = vmatprep.subr.mxu0 0.0
        %1012 = vmatpush1.msra.mxu0 0.0
        %1013 = vmatprep.subr.mxu0 0.0
        %1014 = vmatpush1.msra.mxu0 0.0
        %1015 = vmatprep.subr.mxu0 0.0
        %1016 = vmatpush1.msra.mxu0 0.0
        %1017 = vmatprep.subr.mxu0 0.0
        %1018 = vmatpush1.msra.mxu0 0.0
        %1019 = vmatprep.subr.mxu0 0.0
        %1020 = vmatpush1.msra.mxu0 0.0
        %1021 = vmatprep.subr.mxu0 0.0
        %1022 = vmatpush1.msra.mxu0 0.0
        %1023 = vmatprep.subr.mxu0 0.0
        %1024 = vmatpush1.msra.mxu0 0.0
        %1025 = vmatprep.subr.mxu0 0.0
        %1026 = vmatpush1.msra.mxu0 0.0
        %1027 = vmatprep.subr.mxu0 0.0
        %1028 = vmatpush1.msra.mxu0 0.0
        %1029 = vmatprep.subr.mxu0 0.0
        %1030 = vmatpush1.msra.mxu0 0.0
        %1031 = vmatprep.subr.mxu0 0.0
        %1032 = vmatpush1.msra.mxu0 0.0
        %1033 = vmatprep.subr.mxu0 0.0
        %1034 = vmatpush1.msra.mxu0 0.0
        %1035 = vmatprep.subr.mxu0 0.0
        %1036 = vmatpush1.msra.mxu0 0.0
        %1037 = vmatprep.subr.mxu0 0.0
        %1038 = vmatpush1.msra.mxu0 0.0
        %1039 = vmatprep.subr.mxu0 0.0
        %1040 = vmatpush1.msra.mxu0 0.0
        %1041 = vmatprep.subr.mxu0 0.0
        %1042 = vmatpush1.msra.mxu0 0.0
        %1043 = vmatprep.subr.mxu0 0.0
        %1044 = vmatpush1.msra.mxu0 0.0
        %1045 = vmatprep.subr.mxu0 0.0
        %1046 = vmatpush1.msra.mxu0 0.0
        %1047 = vmatprep.subr.mxu0 0.0
        %1048 = vmatpush1.msra.mxu0 0.0
        %1049 = vmatprep.subr.mxu0 0.0
        %1050 = vmatpush1.msra.mxu0 0.0
        %1051 = vmatprep.subr.mxu0 0.0
        %1052 = vmatpush1.msra.mxu0 0.0
        %1053 = vmatprep.subr.mxu0 0.0
        %1054 = vmatpush1.msra.mxu0 0.0
        %1055 = vmatprep.mubr.f32.mxu0 0.0
        %1056 = vmatmul.mubr.f32.gmra.mrb[0].mxu0 %v270
        %v1057 = vpop.f32.mrb[0].mxu0
        %v1058 = vadd.f32 0.0, %v1057
        %v1059 = vpop.f32.mrb[0].mxu0
        %1060 = vmatprep.mubr.f32.mxu0 0.0
        %1061 = vmatmul.mubr.f32.gmra.mrb[0].mxu0 %v273
        %v1062 = vpop.f32.mrb[0].mxu0
        %v1063 = vadd.f32 0.0, %v1062
        %v1064 = vpop.f32.mrb[0].mxu0
        %1065 = vdwg.mxu0
        %1066 = vmatprep.subr.mxu0 0.0
        %1067 = vmatpush1.msra.mxu0 %v944
        %1068 = vmatprep.subr.mxu0 0.0
        %1069 = vmatpush1.msra.mxu0 %v945
        %1070 = vmatprep.subr.mxu0 0.0
        %1071 = vmatpush1.msra.mxu0 0.0
        %1072 = vmatprep.subr.mxu0 0.0
        %1073 = vmatpush1.msra.mxu0 0.0
        %1074 = vmatprep.subr.mxu0 0.0
        %1075 = vmatpush1.msra.mxu0 0.0
        %1076 = vmatprep.subr.mxu0 0.0
        %1077 = vmatpush1.msra.mxu0 0.0
        %1078 = vmatprep.subr.mxu0 0.0
        %1079 = vmatpush1.msra.mxu0 0.0
        %1080 = vmatprep.subr.mxu0 0.0
        %1081 = vmatpush1.msra.mxu0 0.0
        %1082 = vmatprep.subr.mxu0 0.0
        %1083 = vmatpush1.msra.mxu0 0.0
        %1084 = vmatprep.subr.mxu0 0.0
        %1085 = vmatpush1.msra.mxu0 0.0
        %1086 = vmatprep.subr.mxu0 0.0
        %1087 = vmatpush1.msra.mxu0 0.0
        %1088 = vmatprep.subr.mxu0 0.0
        %1089 = vmatpush1.msra.mxu0 0.0
        %1090 = vmatprep.subr.mxu0 0.0
        %1091 = vmatpush1.msra.mxu0 0.0
        %1092 = vmatprep.subr.mxu0 0.0
        %1093 = vmatpush1.msra.mxu0 0.0
        %1094 = vmatprep.subr.mxu0 0.0
        %1095 = vmatpush1.msra.mxu0 0.0
        %1096 = vmatprep.subr.mxu0 0.0
        %1097 = vmatpush1.msra.mxu0 0.0
        %1098 = vmatprep.subr.mxu0 0.0
        %1099 = vmatpush1.msra.mxu0 0.0
        %1100 = vmatprep.subr.mxu0 0.0
        %1101 = vmatpush1.msra.mxu0 0.0
        %1102 = vmatprep.subr.mxu0 0.0
        %1103 = vmatpush1.msra.mxu0 0.0
        %1104 = vmatprep.subr.mxu0 0.0
        %1105 = vmatpush1.msra.mxu0 0.0
        %1106 = vmatprep.subr.mxu0 0.0
        %1107 = vmatpush1.msra.mxu0 0.0
        %1108 = vmatprep.subr.mxu0 0.0
        %1109 = vmatpush1.msra.mxu0 0.0
        %1110 = vmatprep.subr.mxu0 0.0
        %1111 = vmatpush1.msra.mxu0 0.0
        %1112 = vmatprep.subr.mxu0 0.0
        %1113 = vmatpush1.msra.mxu0 0.0
        %1114 = vmatprep.subr.mxu0 0.0
        %1115 = vmatpush1.msra.mxu0 0.0
        %1116 = vmatprep.subr.mxu0 0.0
        %1117 = vmatpush1.msra.mxu0 0.0
        %1118 = vmatprep.subr.mxu0 0.0
        %1119 = vmatpush1.msra.mxu0 0.0
        %1120 = vmatprep.subr.mxu0 0.0
        %1121 = vmatpush1.msra.mxu0 0.0
        %1122 = vmatprep.subr.mxu0 0.0
        %1123 = vmatpush1.msra.mxu0 0.0
        %1124 = vmatprep.subr.mxu0 0.0
        %1125 = vmatpush1.msra.mxu0 0.0
        %1126 = vmatprep.subr.mxu0 0.0
        %1127 = vmatpush1.msra.mxu0 0.0
        %1128 = vmatprep.subr.mxu0 0.0
        %1129 = vmatpush1.msra.mxu0 0.0
        %1130 = vmatprep.mubr.f32.mxu0 0.0
        %1131 = vmatmul.mubr.f32.gmra.mrb[0].mxu0 %v351
        %v1132 = vpop.f32.mrb[0].mxu0
        %v1133 = vadd.f32 0.0, %v1132
        %v1134 = vpop.f32.mrb[0].mxu0
        %1135 = vmatprep.mubr.f32.mxu0 0.0
        %1136 = vmatmul.mubr.f32.gmra.mrb[0].mxu0 %v354
        %v1137 = vpop.f32.mrb[0].mxu0
        %v1138 = vadd.f32 0.0, %v1137
        %v1139 = vpop.f32.mrb[0].mxu0
        %1140 = vdwg.mxu0
        %1141 = vmatprep.subr.mxu0 0.0
        %1142 = vmatpush1.msra.mxu0 %v946
        %1143 = vmatprep.subr.mxu0 0.0
        %1144 = vmatpush1.msra.mxu0 %v947
        %1145 = vmatprep.subr.mxu0 0.0
        %1146 = vmatpush1.msra.mxu0 0.0
        %1147 = vmatprep.subr.mxu0 0.0
        %1148 = vmatpush1.msra.mxu0 0.0
        %1149 = vmatprep.subr.mxu0 0.0
        %1150 = vmatpush1.msra.mxu0 0.0
        %1151 = vmatprep.subr.mxu0 0.0
        %1152 = vmatpush1.msra.mxu0 0.0
        %1153 = vmatprep.subr.mxu0 0.0
        %1154 = vmatpush1.msra.mxu0 0.0
        %1155 = vmatprep.subr.mxu0 0.0
        %1156 = vmatpush1.msra.mxu0 0.0
        %1157 = vmatprep.subr.mxu0 0.0
        %1158 = vmatpush1.msra.mxu0 0.0
        %1159 = vmatprep.subr.mxu0 0.0
        %1160 = vmatpush1.msra.mxu0 0.0
        %1161 = vmatprep.subr.mxu0 0.0
        %1162 = vmatpush1.msra.mxu0 0.0
        %1163 = vmatprep.subr.mxu0 0.0
        %1164 = vmatpush1.msra.mxu0 0.0
        %1165 = vmatprep.subr.mxu0 0.0
        %1166 = vmatpush1.msra.mxu0 0.0
        %1167 = vmatprep.subr.mxu0 0.0
        %1168 = vmatpush1.msra.mxu0 0.0
        %1169 = vmatprep.subr.mxu0 0.0
        %1170 = vmatpush1.msra.mxu0 0.0
        %1171 = vmatprep.subr.mxu0 0.0
        %1172 = vmatpush1.msra.mxu0 0.0
        %1173 = vmatprep.subr.mxu0 0.0
        %1174 = vmatpush1.msra.mxu0 0.0
        %1175 = vmatprep.subr.mxu0 0.0
        %1176 = vmatpush1.msra.mxu0 0.0
        %1177 = vmatprep.subr.mxu0 0.0
        %1178 = vmatpush1.msra.mxu0 0.0
        %1179 = vmatprep.subr.mxu0 0.0
        %1180 = vmatpush1.msra.mxu0 0.0
        %1181 = vmatprep.subr.mxu0 0.0
        %1182 = vmatpush1.msra.mxu0 0.0
        %1183 = vmatprep.subr.mxu0 0.0
        %1184 = vmatpush1.msra.mxu0 0.0
        %1185 = vmatprep.subr.mxu0 0.0
        %1186 = vmatpush1.msra.mxu0 0.0
        %1187 = vmatprep.subr.mxu0 0.0
        %1188 = vmatpush1.msra.mxu0 0.0
        %1189 = vmatprep.subr.mxu0 0.0
        %1190 = vmatpush1.msra.mxu0 0.0
        %1191 = vmatprep.subr.mxu0 0.0
        %1192 = vmatpush1.msra.mxu0 0.0
        %1193 = vmatprep.subr.mxu0 0.0
        %1194 = vmatpush1.msra.mxu0 0.0
        %1195 = vmatprep.subr.mxu0 0.0
        %1196 = vmatpush1.msra.mxu0 0.0
        %1197 = vmatprep.subr.mxu0 0.0
        %1198 = vmatpush1.msra.mxu0 0.0
        %1199 = vmatprep.subr.mxu0 0.0
        %1200 = vmatpush1.msra.mxu0 0.0
        %1201 = vmatprep.subr.mxu0 0.0
        %1202 = vmatpush1.msra.mxu0 0.0
        %1203 = vmatprep.subr.mxu0 0.0
        %1204 = vmatpush1.msra.mxu0 0.0
        %1205 = vmatprep.mubr.f32.mxu0 0.0
        %1206 = vmatmul.mubr.f32.gmra.mrb[0].mxu0 %v432
        %v1207 = vpop.f32.mrb[0].mxu0
        %v1208 = vadd.f32 0.0, %v1207
        %v1209 = vpop.f32.mrb[0].mxu0
        %1210 = vmatprep.mubr.f32.mxu0 0.0
        %1211 = vmatmul.mubr.f32.gmra.mrb[0].mxu0 %v435
        %v1212 = vpop.f32.mrb[0].mxu0
        %v1213 = vadd.f32 0.0, %v1212
        %v1214 = vpop.f32.mrb[0].mxu0
        %1215 = vdwg.mxu0
        %1216 = vmatprep.subr.mxu0 0.0
        %1217 = vmatpush1.msra.mxu0 %v948
        %1218 = vmatprep.subr.mxu0 0.0
        %1219 = vmatpush1.msra.mxu0 %v949
        %1220 = vmatprep.subr.mxu0 0.0
        %1221 = vmatpush1.msra.mxu0 0.0
        %1222 = vmatprep.subr.mxu0 0.0
        %1223 = vmatpush1.msra.mxu0 0.0
        %1224 = vmatprep.subr.mxu0 0.0
        %1225 = vmatpush1.msra.mxu0 0.0
        %1226 = vmatprep.subr.mxu0 0.0
        %1227 = vmatpush1.msra.mxu0 0.0
        %1228 = vmatprep.subr.mxu0 0.0
        %1229 = vmatpush1.msra.mxu0 0.0
        %1230 = vmatprep.subr.mxu0 0.0
        %1231 = vmatpush1.msra.mxu0 0.0
        %1232 = vmatprep.subr.mxu0 0.0
        %1233 = vmatpush1.msra.mxu0 0.0
        %1234 = vmatprep.subr.mxu0 0.0
        %1235 = vmatpush1.msra.mxu0 0.0
        %1236 = vmatprep.subr.mxu0 0.0
        %1237 = vmatpush1.msra.mxu0 0.0
        %1238 = vmatprep.subr.mxu0 0.0
        %1239 = vmatpush1.msra.mxu0 0.0
        %1240 = vmatprep.subr.mxu0 0.0
        %1241 = vmatpush1.msra.mxu0 0.0
        %1242 = vmatprep.subr.mxu0 0.0
        %1243 = vmatpush1.msra.mxu0 0.0
        %1244 = vmatprep.subr.mxu0 0.0
        %1245 = vmatpush1.msra.mxu0 0.0
        %1246 = vmatprep.subr.mxu0 0.0
        %1247 = vmatpush1.msra.mxu0 0.0
        %1248 = vmatprep.subr.mxu0 0.0
        %1249 = vmatpush1.msra.mxu0 0.0
        %1250 = vmatprep.subr.mxu0 0.0
        %1251 = vmatpush1.msra.mxu0 0.0
        %1252 = vmatprep.subr.mxu0 0.0
        %1253 = vmatpush1.msra.mxu0 0.0
        %1254 = vmatprep.subr.mxu0 0.0
        %1255 = vmatpush1.msra.mxu0 0.0
        %1256 = vmatprep.subr.mxu0 0.0
        %1257 = vmatpush1.msra.mxu0 0.0
        %1258 = vmatprep.subr.mxu0 0.0
        %1259 = vmatpush1.msra.mxu0 0.0
        %1260 = vmatprep.subr.mxu0 0.0
        %1261 = vmatpush1.msra.mxu0 0.0
        %1262 = vmatprep.subr.mxu0 0.0
        %1263 = vmatpush1.msra.mxu0 0.0
        %1264 = vmatprep.subr.mxu0 0.0
        %1265 = vmatpush1.msra.mxu0 0.0
        %1266 = vmatprep.subr.mxu0 0.0
        %1267 = vmatpush1.msra.mxu0 0.0
        %1268 = vmatprep.subr.mxu0 0.0
        %1269 = vmatpush1.msra.mxu0 0.0
        %1270 = vmatprep.subr.mxu0 0.0
        %1271 = vmatpush1.msra.mxu0 0.0
        %1272 = vmatprep.subr.mxu0 0.0
        %1273 = vmatpush1.msra.mxu0 0.0
        %1274 = vmatprep.subr.mxu0 0.0
        %1275 = vmatpush1.msra.mxu0 0.0
        %1276 = vmatprep.subr.mxu0 0.0
        %1277 = vmatpush1.msra.mxu0 0.0
        %1278 = vmatprep.subr.mxu0 0.0
        %1279 = vmatpush1.msra.mxu0 0.0
        %1280 = vmatprep.mubr.f32.mxu0 0.0
        %1281 = vmatmul.mubr.f32.gmra.mrb[0].mxu0 %v513
        %v1282 = vpop.f32.mrb[0].mxu0
        %v1283 = vadd.f32 0.0, %v1282
        %v1284 = vpop.f32.mrb[0].mxu0
        %1285 = vmatprep.mubr.f32.mxu0 0.0
        %1286 = vmatmul.mubr.f32.gmra.mrb[0].mxu0 %v516
        %v1287 = vpop.f32.mrb[0].mxu0
        %v1288 = vadd.f32 0.0, %v1287
        %v1289 = vpop.f32.mrb[0].mxu0
        %1290 = vdwg.mxu0
        %v1291 = vadd.f32 %v244, %v1058
        %v1292 = vadd.f32 %v245, %v1063
        %v1293 = vadd.f32 %v246, %v1133
        %v1294 = vadd.f32 %v247, %v1138
        %v1295 = vadd.f32 %v248, %v1208
        %v1296 = vadd.f32 %v249, %v1213
        %v1297 = vadd.f32 %v250, %v1283
        %v1298 = vadd.f32 %v251, %v1288
        %1307 = vrot.lane.b32.xlu0 %v1291, 24
        %v1308 = vpop.permute.xlu0 %1307
        %1309 = vrot.lane.b32.xlu0 %v1292, 24
        %v1310 = vpop.permute.xlu0 %1309
        %1311 = vrot.lane.b32.xlu0 %v1293, 24
        %v1312 = vpop.permute.xlu0 %1311
        %1313 = vrot.lane.b32.xlu0 %v1294, 24
        %v1314 = vpop.permute.xlu0 %1313
        %1315 = vrot.lane.b32.xlu0 %v1295, 24
        %v1316 = vpop.permute.xlu0 %1315
        %1317 = vrot.lane.b32.xlu0 %v1296, 24
        %v1318 = vpop.permute.xlu0 %1317
        %1319 = vrot.lane.b32.xlu0 %v1297, 24
        %v1320 = vpop.permute.xlu0 %1319
        %1321 = vrot.lane.b32.xlu0 %v1298, 24
        %v1322 = vpop.permute.xlu0 %1321
        %vm1331 = vcmask 261312
        %1332 = vst.msk [vmem:[#allocation2] sm:$0xff] %vm1331, %v1308
        %1333 = vst.msk [vmem:[#allocation2 + $0x8] sm:$0xff] %vm1331, %v1310
        %1334 = vst.msk [vmem:[#allocation2 + $0x10] sm:$0xff] %vm1331, %v1312
        %1335 = vst.msk [vmem:[#allocation2 + $0x18] sm:$0xff] %vm1331, %v1314
        %1336 = vst.msk [vmem:[#allocation2 + $0x20] sm:$0xff] %vm1331, %v1316
        %1337 = vst.msk [vmem:[#allocation2 + $0x28] sm:$0xff] %vm1331, %v1318
        %1338 = vst.msk [vmem:[#allocation2 + $0x30] sm:$0xff] %vm1331, %v1320
        %1339 = vst.msk [vmem:[#allocation2 + $0x38] sm:$0xff] %vm1331, %v1322
        %v1340 = vld [vmem:[#allocation2] sm:$0xff]
        %v1341 = vld [vmem:[#allocation2 + $0x8] sm:$0xff]
        %v1342 = vld [vmem:[#allocation2 + $0x10] sm:$0xff]
        %v1343 = vld [vmem:[#allocation2 + $0x18] sm:$0xff]
        %v1344 = vld [vmem:[#allocation2 + $0x20] sm:$0xff]
        %v1345 = vld [vmem:[#allocation2 + $0x28] sm:$0xff]
        %v1346 = vld [vmem:[#allocation2 + $0x30] sm:$0xff]
        %v1347 = vld [vmem:[#allocation2 + $0x38] sm:$0xff]
        %v1348 = vld [vmem:[%s2] sm:$0xff]
        %v1349 = vld [vmem:[%s2 + $0x8] sm:$0xff]
        %v1350 = vld [vmem:[%s2 + $0x10] sm:$0xff]
        %v1351 = vld [vmem:[%s2 + $0x18] sm:$0xff]
        %v1352 = vld [vmem:[%s3] sm:$0x1]
        %v1354 = vlaneseq
        %v1355 = vshrl.u32 %v1354, 7
        %v1356 = vsub.s32 0, %v1355
        %v1357 = vrot.slane %v1352, %v1356
        %vm1359 = vcmask 261120
        %v1361 = vsel %vm1359, %v1340, 0
        %v1364 = vsel %vm1359, %v1341, 0
        %v1367 = vsel %vm1359, %v1342, 0
        %v1370 = vsel %vm1359, %v1343, 0
        %v1373 = vsel %vm1359, %v1344, 0
        %v1376 = vsel %vm1359, %v1345, 0
        %v1379 = vsel %vm1359, %v1346, 0
        %v1382 = vsel %vm1359, %v1347, 0
        %1384 = vmatprep.subr.mxu0 0.0
        %1385 = vmatpush1.msra.mxu0 %v1348
        %1386 = vmatprep.subr.mxu0 0.0
        %1387 = vmatpush1.msra.mxu0 %v1349
        %1388 = vmatprep.subr.mxu0 0.0
        %1389 = vmatpush1.msra.mxu0 %v1350
        %1390 = vmatprep.subr.mxu0 0.0
        %1391 = vmatpush1.msra.mxu0 %v1351
        %1392 = vmatprep.subr.mxu0 0.0
        %1393 = vmatpush1.msra.mxu0 0.0
        %1394 = vmatprep.subr.mxu0 0.0
        %1395 = vmatpush1.msra.mxu0 0.0
        %1396 = vmatprep.subr.mxu0 0.0
        %1397 = vmatpush1.msra.mxu0 0.0
        %1398 = vmatprep.subr.mxu0 0.0
        %1399 = vmatpush1.msra.mxu0 0.0
        %1400 = vmatprep.subr.mxu0 0.0
        %1401 = vmatpush1.msra.mxu0 0.0
        %1402 = vmatprep.subr.mxu0 0.0
        %1403 = vmatpush1.msra.mxu0 0.0
        %1404 = vmatprep.subr.mxu0 0.0
        %1405 = vmatpush1.msra.mxu0 0.0
        %1406 = vmatprep.subr.mxu0 0.0
        %1407 = vmatpush1.msra.mxu0 0.0
        %1408 = vmatprep.subr.mxu0 0.0
        %1409 = vmatpush1.msra.mxu0 0.0
        %1410 = vmatprep.subr.mxu0 0.0
        %1411 = vmatpush1.msra.mxu0 0.0
        %1412 = vmatprep.subr.mxu0 0.0
        %1413 = vmatpush1.msra.mxu0 0.0
        %1414 = vmatprep.subr.mxu0 0.0
        %1415 = vmatpush1.msra.mxu0 0.0
        %1416 = vmatprep.subr.mxu0 0.0
        %1417 = vmatpush1.msra.mxu0 0.0
        %1418 = vmatprep.subr.mxu0 0.0
        %1419 = vmatpush1.msra.mxu0 0.0
        %1420 = vmatprep.subr.mxu0 0.0
        %1421 = vmatpush1.msra.mxu0 0.0
        %1422 = vmatprep.subr.mxu0 0.0
        %1423 = vmatpush1.msra.mxu0 0.0
        %1424 = vmatprep.subr.mxu0 0.0
        %1425 = vmatpush1.msra.mxu0 0.0
        %1426 = vmatprep.subr.mxu0 0.0
        %1427 = vmatpush1.msra.mxu0 0.0
        %1428 = vmatprep.subr.mxu0 0.0
        %1429 = vmatpush1.msra.mxu0 0.0
        %1430 = vmatprep.subr.mxu0 0.0
        %1431 = vmatpush1.msra.mxu0 0.0
        %1432 = vmatprep.subr.mxu0 0.0
        %1433 = vmatpush1.msra.mxu0 0.0
        %1434 = vmatprep.subr.mxu0 0.0
        %1435 = vmatpush1.msra.mxu0 0.0
        %1436 = vmatprep.subr.mxu0 0.0
        %1437 = vmatpush1.msra.mxu0 0.0
        %1438 = vmatprep.subr.mxu0 0.0
        %1439 = vmatpush1.msra.mxu0 0.0
        %1440 = vmatprep.subr.mxu0 0.0
        %1441 = vmatpush1.msra.mxu0 0.0
        %1442 = vmatprep.subr.mxu0 0.0
        %1443 = vmatpush1.msra.mxu0 0.0
        %1444 = vmatprep.subr.mxu0 0.0
        %1445 = vmatpush1.msra.mxu0 0.0
        %1446 = vmatprep.subr.mxu0 0.0
        %1447 = vmatpush1.msra.mxu0 0.0
        %1448 = vmatprep.mubr.f32.mxu0 0.0
        %1449 = vmatmul.mubr.f32.gmra.mrb[0].mxu0 %v1361
        %v1450 = vpop.f32.mrb[0].mxu0
        %v1451 = vadd.f32 %v1357, %v1450
        %v1452 = vpop.f32.mrb[0].mxu0
        %1453 = vmatprep.mubr.f32.mxu0 0.0
        %1454 = vmatmul.mubr.f32.gmra.mrb[0].mxu0 %v1364
        %v1455 = vpop.f32.mrb[0].mxu0
        %v1456 = vadd.f32 %v1357, %v1455
        %v1457 = vpop.f32.mrb[0].mxu0
        %1458 = vmatprep.mubr.f32.mxu0 0.0
        %1459 = vmatmul.mubr.f32.gmra.mrb[0].mxu0 %v1367
        %v1460 = vpop.f32.mrb[0].mxu0
        %v1461 = vadd.f32 %v1357, %v1460
        %v1462 = vpop.f32.mrb[0].mxu0
        %1463 = vmatprep.mubr.f32.mxu0 0.0
        %1464 = vmatmul.mubr.f32.gmra.mrb[0].mxu0 %v1370
        %v1465 = vpop.f32.mrb[0].mxu0
        %v1466 = vadd.f32 %v1357, %v1465
        %v1467 = vpop.f32.mrb[0].mxu0
        %1468 = vmatprep.mubr.f32.mxu0 0.0
        %1469 = vmatmul.mubr.f32.gmra.mrb[0].mxu0 %v1373
        %v1470 = vpop.f32.mrb[0].mxu0
        %v1471 = vadd.f32 %v1357, %v1470
        %v1472 = vpop.f32.mrb[0].mxu0
        %1473 = vmatprep.mubr.f32.mxu0 0.0
        %1474 = vmatmul.mubr.f32.gmra.mrb[0].mxu0 %v1376
        %v1475 = vpop.f32.mrb[0].mxu0
        %v1476 = vadd.f32 %v1357, %v1475
        %v1477 = vpop.f32.mrb[0].mxu0
        %1478 = vmatprep.mubr.f32.mxu0 0.0
        %1479 = vmatmul.mubr.f32.gmra.mrb[0].mxu0 %v1379
        %v1480 = vpop.f32.mrb[0].mxu0
        %v1481 = vadd.f32 %v1357, %v1480
        %v1482 = vpop.f32.mrb[0].mxu0
        %1483 = vmatprep.mubr.f32.mxu0 0.0
        %1484 = vmatmul.mubr.f32.gmra.mrb[0].mxu0 %v1382
        %v1485 = vpop.f32.mrb[0].mxu0
        %v1486 = vadd.f32 %v1357, %v1485
        %v1487 = vpop.f32.mrb[0].mxu0
        %1488 = vdwg.mxu0
        %1489 = vst [vmem:[%s211] sm:$0xff] %v1451
        %1490 = vst [vmem:[%s211 + $0x8] sm:$0xff] %v1456
        %1491 = vst [vmem:[%s211 + $0x10] sm:$0xff] %v1461
        %1492 = vst [vmem:[%s211 + $0x18] sm:$0xff] %v1466
        %1493 = vst [vmem:[%s211 + $0x20] sm:$0xff] %v1471
        %1494 = vst [vmem:[%s211 + $0x28] sm:$0xff] %v1476
        %1495 = vst [vmem:[%s211 + $0x30] sm:$0xff] %v1481
        %1496 = vst [vmem:[%s211 + $0x38] sm:$0xff] %v1486
        %s1497 = sand.u32 %s120, 1
        %s1498 = scalar_lea.sflag [#allocation4], %s1497
        %s1499 = sand.u32 %s120, 1
        %s1500 = smul.addr %s1499, 64
        %s1501 = scalar_lea.vmem [#allocation3], %s1500
        // Predicated region
        $region37: #{tpu_custom_call.1} parent=35 // pred_check
          %p1502 = pneg %p130
        $region38: #{tpu_custom_call.1} parent=35 // pred_check_branch
          %1504 = sbr.rel (%p1502) target = $region40
        $region39: #{tpu_custom_call.1} parent=35 // pred_region
          %s1505 = smul.u32 4, %s18
          %s1507 = ssub.s32 1024, 1024
          %1508 = vsyncadd %s1498, %s1507
          %s1509 = smul.addr %s1505, 2
          %s1510 = smul.addr %s1509, 128
          %s1511 = scalar_lea.hbm %s4, %s1510
          %s1512 = sshll.u32 %s1501, 4
          %s1513 = int_to_ptr.vmem [resolvable:$true] %s1512
          %1518 = dma.vmem_to_hbm [thread:$0]  %s1513, 1024, %s1511, %s1498, 128, 128, 8
        $region40: #{tpu_custom_call.1} parent=35 // pred_fallthru
          _
      $region36: #{tpu_custom_call.1} parent=5 // pred_fallthru
        _
      %p1519 = scmp.le.s32.totalorder 2, %s13
      // Predicated region
      $region41: #{tpu_custom_call.1} parent=5 // pred_check
        %p1520 = pneg %p1519
      $region42: #{tpu_custom_call.1} parent=5 // pred_check_branch
        %1522 = sbr.rel (%p1520) target = $region44
      $region43: #{tpu_custom_call.1} parent=5 // pred_region
        %s1523 = ssub.s32 %s13, 2
        // Predicated region
        $region45: #{tpu_custom_call.1} parent=43 // pred_check
          %p1524 = pneg %p136
        $region46: #{tpu_custom_call.1} parent=43 // pred_check_branch
          %1526 = sbr.rel (%p1524) target = $region48
        $region47: #{tpu_custom_call.1} parent=43 // pred_region
          %s1527 = sand.u32 %s121, 1
          %s1528 = scalar_lea.sflag [#allocation4], %s1527
          %s1529 = sand.u32 %s121, 1
          %s1530 = smul.addr %s1529, 64
          %s1531 = scalar_lea.vmem [#allocation3], %s1530
          %1532 = dma.done %s1528, 1024
        $region48: #{tpu_custom_call.1} parent=43 // pred_fallthru
          _
      $region44: #{tpu_custom_call.1} parent=5 // pred_fallthru
        _
    $region6: #{tpu_custom_call.1} parent=1 // loop_footer
      %s17 = sadd.s32 1, %s13
    $region7: #{tpu_custom_call.1} parent=1 // loop_footer_branch
      %12 = sbr.rel target = $region3
    $region8: #{tpu_custom_call.1} parent=1 // loop_exit
      _
    %1533 = vsyncpa [#allocation4], 1
    %s1534 = scalar_lea.sflag [#allocation4], 1
    %1535 = vsyncpa %s1534, 1

</llo_original>
